<compile_context>
chip_gen: v7x
topology: tpu7x:2x2x1
jax: 0.10.0
libtpu: 0.0.40
codegen_flags: <defaults>
</compile_context>

<pallas_src>
import functools

import jax
import jax.numpy as jnp
from jax.experimental import pallas as pl
from jax.experimental.pallas import tpu as pltpu


# ----------------------------- config (args) ---------------------------------
class Args:
    style_D = 6            # -> 5 linear layers, skip at layer index 4
    embed_freq_coor = 2    # x feature dim = 2*3*2 + 3 = 15
    vae_latent = 8
    netwidth = 32


def layer_dims(args):
    """Reproduce the module __init__ loop to get (in_dim, out_dim) per layer."""
    x_dim = args.embed_freq_coor * 3 * 2 + 3
    input_ch = x_dim + args.vae_latent
    skips = [4]
    dims = []
    dim = input_ch
    for i in range(args.style_D - 1):
        if i in skips:
            dim += x_dim
            dims.append((dim, args.netwidth))
            break
        dims.append((dim, args.netwidth))
        dim = args.netwidth + args.vae_latent
    return dims, x_dim, skips


def _round_up(v, m):
    return ((v + m - 1) // m) * m


# ------------------------- host-side weight packing ---------------------------
def pack_style_mlp_params(weights, biases, x_dim, latent_dim, skips,
                          compute_dtype=jnp.bfloat16):
    """Fuse / pre-split / transpose all layer params host-side (feature-major).

    Fused "front" layout (n_front = width*(n_layers+1) rows):
      rows [0:width]                 layer-0 x+latent weights (+ bias)
      rows [width*j : width*(j+1)]   latent weights (+ bias) of layer j>=1
      rows [width*n_layers : +width] x (skip) weights of the skip layer

    front = w_fx @ x^T + w_fl @ latent^T + bias computes, in one shot, the
    layer-0 pre-activation plus every layer's latent/bias/skip contribution.

    Weights here are (in_dim, out_dim); a PyTorch state_dict Linear weight
    would need a transpose before packing.
    """
    n_layers = len(weights)
    width = weights[0].shape[1]
    skip_layer = next((i for i in range(n_layers) if i in skips), None)
    n_front = width * (n_layers + (1 if skip_layer is not None else 0))

    # Pad the tiny contraction dims to the bf16 sublane tile (16).
    x_dim_p = _round_up(x_dim, 16)
    lat_dim_p = _round_up(latent_dim, 16)

    w_fx = jnp.zeros((n_front, x_dim_p), jnp.float32)
    w_fl = jnp.zeros((n_front, lat_dim_p), jnp.float32)
    bias = jnp.zeros((n_front, 1), jnp.float32)

    # layer 0: full pre-activation in rows [0:width]
    w0 = jnp.asarray(weights[0], jnp.float32)
    w_fx = w_fx.at[0:width, 0:x_dim].set(w0[0:x_dim, :].T)
    w_fl = w_fl.at[0:width, 0:latent_dim].set(w0[x_dim:x_dim + latent_dim, :].T)
    bias = bias.at[0:width, 0].set(jnp.asarray(biases[0], jnp.float32).reshape(-1))

    # layers 1..: latent contribution + bias in rows [width*j : width*(j+1)]
    for j in range(1, n_layers):
        wj = jnp.asarray(weights[j], jnp.float32)
        r0 = width * j
        w_fl = w_fl.at[r0:r0 + width, 0:latent_dim].set(
            wj[width:width + latent_dim, :].T)
        bias = bias.at[r0:r0 + width, 0].set(
            jnp.asarray(biases[j], jnp.float32).reshape(-1))

    # skip layer's x contribution in rows [width*n_layers : +width]
    if skip_layer is not None:
        wsk = jnp.asarray(weights[skip_layer], jnp.float32)
        r0 = width * n_layers
        w_fx = w_fx.at[r0:r0 + width, 0:x_dim].set(
            wsk[width + latent_dim:width + latent_dim + x_dim, :].T)

    # h-path weights of layers 1..n-1, transposed to (out, in), stacked.
    w_h = jnp.stack([jnp.asarray(weights[j], jnp.float32)[:width, :].T
                     for j in range(1, n_layers)], axis=0)

    return (w_fx.astype(compute_dtype), w_fl.astype(compute_dtype), bias,
            w_h.astype(compute_dtype), skip_layer, x_dim_p, lat_dim_p)


# ------------------------------- kernel ---------------------------------------
def style_mlp_kernel(xt_ref, lt_ref, wfx_ref, wfl_ref, b_ref, wh_ref, out_ref,
                     *, width, n_layers, skip_layer):
    # Fused "front": layer-0 pre-act + every layer's latent/bias + skip-x term.
    # (n_front, T) = (n_front,kx)@(kx,T) + (n_front,kl)@(kl,T) + (n_front,1)
    front = jnp.dot(wfx_ref[...], xt_ref[...],
                    preferred_element_type=jnp.float32)
    front = front + jnp.dot(wfl_ref[...], lt_ref[...],
                            preferred_element_type=jnp.float32)
    front = front + b_ref[...]                              # VPU broadcast add

    h = jnp.maximum(front[0:width, :], 0.0)                 # layer 0 (f32)
    for j in range(1, n_layers):                            # layers 1..n-1
        acc = jnp.dot(wh_ref[j - 1], h.astype(wh_ref.dtype),
                      preferred_element_type=jnp.float32)   # (32,32)@(32,T)
        acc = acc + front[width * j:width * (j + 1), :]     # latent + bias
        if skip_layer is not None and j == skip_layer:
            acc = acc + front[width * n_layers:width * (n_layers + 1), :]
        h = jnp.maximum(acc, 0.0)

    out_ref[...] = h.astype(out_ref.dtype)                  # lane-dense store


# ------------------------------ wrapper ---------------------------------------
def pick_tile_rows(n, *, max_tile=2048, lane_mult=256):
    """Row tile: multiple of 256 (full MXU lane tile on v6e/v7x), sized so the
    grid has an even number of roughly equal steps (v7x: 2 TensorCores).
    On v5e, pass max_tile=1024 if ld/st slot utilization climbs."""
    n_steps = 2 * max(1, pl.cdiv(n, 2 * max_tile))
    t = _round_up(pl.cdiv(n, n_steps), lane_mult)
    return max(t, lane_mult)


def style_mlp_forward(x, latent, weights, biases, skips, *, tile_rows=None,
                      compute_dtype=jnp.bfloat16):
    """x: (N, x_dim), latent: (N, latent_dim). Returns (N, netwidth) float32."""
    n, x_dim = x.shape
    latent_dim = latent.shape[-1]
    width = weights[0].shape[-1]
    n_layers = len(weights)

    (w_fx, w_fl, bias, w_h, skip_layer, x_dim_p, lat_dim_p
     ) = pack_style_mlp_params(weights, biases, x_dim, latent_dim, skips,
                               compute_dtype=compute_dtype)
    n_front = w_fx.shape[0]

    if tile_rows is None:
        tile_rows = pick_tile_rows(n)
    n_tiles = pl.cdiv(n, tile_rows)
    n_pad = n_tiles * tile_rows

    # Feature-major (transposed) activations in bf16: rows ride the 128 lanes.
    # Zero-padded rows only produce relu(bias) garbage that is sliced off;
    # nothing ever reduces over the padded region.
    x_t = jnp.pad(jnp.transpose(x).astype(compute_dtype),
                  ((0, x_dim_p - x_dim), (0, n_pad - n)))
    l_t = jnp.pad(jnp.transpose(latent).astype(compute_dtype),
                  ((0, lat_dim_p - latent_dim), (0, n_pad - n)))

    kernel = functools.partial(style_mlp_kernel, width=width,
                               n_layers=n_layers, skip_layer=skip_layer)

    out_t = pl.pallas_call(
        kernel,
        out_shape=jax.ShapeDtypeStruct((width, n_pad), jnp.float32),
        grid=(n_tiles,),
        in_specs=[
            pl.BlockSpec((x_dim_p, tile_rows), lambda i: (0, i)),    # x^T tile
            pl.BlockSpec((lat_dim_p, tile_rows), lambda i: (0, i)),  # lat^T tile
            pl.BlockSpec((n_front, x_dim_p), lambda i: (0, 0)),      # fused x wts
            pl.BlockSpec((n_front, lat_dim_p), lambda i: (0, 0)),    # fused lat wts
            pl.BlockSpec((n_front, 1), lambda i: (0, 0)),            # fused biases
            pl.BlockSpec(w_h.shape, lambda i: (0, 0, 0)),            # stacked h wts
        ],
        out_specs=pl.BlockSpec((width, tile_rows), lambda i: (0, i)),
        compiler_params=pltpu.CompilerParams(
            dimension_semantics=("parallel",)),
    )(x_t, l_t, w_fx, w_fl, bias, w_h)

    # TODO(synk): downstream consumers could take out_t (width, N) directly
    # (and in bf16) and skip this write-back transpose; row-major f32 is kept
    # here to match the PyTorch module's output contract.
    return jnp.transpose(out_t[:, :n])


# ------------------------- pure-JAX reference ---------------------------------
def style_mlp_reference(x, latent, weights, biases, skips):
    h = x
    for i, (w, b) in enumerate(zip(weights, biases)):
        h = jnp.concatenate([h, latent], axis=-1)
        if i in skips:
            h = jnp.concatenate([h, x], axis=-1)
        h = jnp.maximum(h @ w + b, 0.0)
    return h


# --------------------------------- main ----------------------------------------
if __name__ == "__main__":
    args = Args()
    dims, x_dim, skips = layer_dims(args)

    key = jax.random.PRNGKey(0)
    keys = jax.random.split(key, 2 + 2 * len(dims))

    N = 300  # deliberately NOT a tile multiple: exercises row padding + 2-step grid
    x = jax.random.normal(keys[0], (N, x_dim), dtype=jnp.float32)
    latent = jax.random.normal(keys[1], (N, args.vae_latent), dtype=jnp.float32)

    weights, biases = [], []
    for li, (din, dout) in enumerate(dims):
        wk = keys[2 + 2 * li]
        bk = keys[3 + 2 * li]
        weights.append(jax.random.normal(wk, (din, dout), dtype=jnp.float32)
                       * (1.0 / jnp.sqrt(din)))
        biases.append(jax.random.normal(bk, (1, dout), dtype=jnp.float32) * 0.01)

    out = style_mlp_forward(x, latent, weights, biases, skips)
    out = jax.block_until_ready(out)

    ref = jax.block_until_ready(style_mlp_reference(x, latent, weights, biases, skips))

    # bf16 MXU operands (f32 accumulation): check relative error, not 1e-4 abs.
    err = float(jnp.max(jnp.abs(out - ref)))
    scale = float(jnp.max(jnp.abs(ref))) + 1e-6
    if err / scale > 5e-2:
        raise AssertionError(
            f"Pallas kernel output mismatch vs reference "
            f"(max abs err {err}, rel {err / scale})")

    print("KERNEL_OK")
</pallas_src>

<mosaic_0001>
module attributes {stable_mosaic.version = 11 : i64} {
  func.func @style_mlp_kernel(%arg0: i32, %arg1: memref<16x256xbf16, #tpu.memory_space<vmem>>, %arg2: memref<16x256xbf16, #tpu.memory_space<vmem>>, %arg3: memref<192x16xbf16, #tpu.memory_space<vmem>>, %arg4: memref<192x16xbf16, #tpu.memory_space<vmem>>, %arg5: memref<192x1xf32, #tpu.memory_space<vmem>>, %arg6: memref<4x32x32xbf16, #tpu.memory_space<vmem>>, %arg7: memref<32x256xf32, #tpu.memory_space<vmem>>) attributes {dimension_semantics = [#tpu.dimension_semantics<parallel>], iteration_bounds = array<i64: 2>, scalar_prefetch = 0 : i64, scratch_operands = 0 : i64, tpu.core_type = #tpu.core_type<tc>, window_params = [{transform_indices = @transform_0, window_bounds = array<i64: 16, 256>}, {transform_indices = @transform_1, window_bounds = array<i64: 16, 256>}, {pipeline_mode = #tpu.pipeline_mode<synchronous>, transform_indices = @transform_2, window_bounds = array<i64: 192, 16>}, {pipeline_mode = #tpu.pipeline_mode<synchronous>, transform_indices = @transform_3, window_bounds = array<i64: 192, 16>}, {pipeline_mode = #tpu.pipeline_mode<synchronous>, transform_indices = @transform_4, window_bounds = array<i64: 192, 1>}, {pipeline_mode = #tpu.pipeline_mode<synchronous>, transform_indices = @transform_5, window_bounds = array<i64: 4, 32, 32>}, {transform_indices = @transform_6, window_bounds = array<i64: 32, 256>}]} {
    %c0 = arith.constant 0 : index
    %c0_0 = arith.constant 0 : index
    %0 = vector.load %arg3[%c0, %c0_0] : memref<192x16xbf16, #tpu.memory_space<vmem>>, vector<192x16xbf16>
    %c0_1 = arith.constant 0 : index
    %c0_2 = arith.constant 0 : index
    %1 = vector.load %arg1[%c0_1, %c0_2] : memref<16x256xbf16, #tpu.memory_space<vmem>>, vector<16x256xbf16>
    %cst = arith.constant dense<0.000000e+00> : vector<192x256xf32>
    %2 = tpu.matmul %0, %1, %cst {dimension_numbers = #tpu.dot_dimension_numbers<[1], [0], [0], [1], [0, 0, 1, 1], [], []>} : vector<192x16xbf16>, vector<16x256xbf16>, vector<192x256xf32> -> vector<192x256xf32>
    %c0_3 = arith.constant 0 : index
    %c0_4 = arith.constant 0 : index
    %3 = vector.load %arg4[%c0_3, %c0_4] : memref<192x16xbf16, #tpu.memory_space<vmem>>, vector<192x16xbf16>
    %c0_5 = arith.constant 0 : index
    %c0_6 = arith.constant 0 : index
    %4 = vector.load %arg2[%c0_5, %c0_6] : memref<16x256xbf16, #tpu.memory_space<vmem>>, vector<16x256xbf16>
    %cst_7 = arith.constant dense<0.000000e+00> : vector<192x256xf32>
    %5 = tpu.matmul %3, %4, %cst_7 {dimension_numbers = #tpu.dot_dimension_numbers<[1], [0], [0], [1], [0, 0, 1, 1], [], []>} : vector<192x16xbf16>, vector<16x256xbf16>, vector<192x256xf32> -> vector<192x256xf32>
    %6 = arith.addf %2, %5 : vector<192x256xf32>
    %c0_8 = arith.constant 0 : index
    %c0_9 = arith.constant 0 : index
    %7 = vector.load %arg5[%c0_8, %c0_9] : memref<192x1xf32, #tpu.memory_space<vmem>>, vector<192x1xf32>
    %8 = vector.broadcast %7 : vector<192x1xf32> to vector<192x256xf32>
    %9 = arith.addf %6, %8 : vector<192x256xf32>
    %10 = vector.extract_strided_slice %9 {offsets = [0, 0], sizes = [32, 256], strides = [1, 1]} : vector<192x256xf32> to vector<32x256xf32>
    %cst_10 = arith.constant 0.000000e+00 : f32
    %11 = vector.broadcast %cst_10 : f32 to vector<32x256xf32>
    %12 = arith.maximumf %10, %11 : vector<32x256xf32>
    %c0_11 = arith.constant 0 : index
    %c0_12 = arith.constant 0 : index
    %c0_13 = arith.constant 0 : index
    %13 = vector.load %arg6[%c0_11, %c0_12, %c0_13] : memref<4x32x32xbf16, #tpu.memory_space<vmem>>, vector<1x32x32xbf16>
    %14 = vector.shape_cast %13 : vector<1x32x32xbf16> to vector<32x32xbf16>
    %15 = arith.truncf %12 : vector<32x256xf32> to vector<32x256xbf16>
    %cst_14 = arith.constant dense<0.000000e+00> : vector<32x256xf32>
    %16 = tpu.matmul %14, %15, %cst_14 {dimension_numbers = #tpu.dot_dimension_numbers<[1], [0], [0], [1], [0, 0, 1, 1], [], []>} : vector<32x32xbf16>, vector<32x256xbf16>, vector<32x256xf32> -> vector<32x256xf32>
    %17 = vector.extract_strided_slice %9 {offsets = [32, 0], sizes = [32, 256], strides = [1, 1]} : vector<192x256xf32> to vector<32x256xf32>
    %18 = arith.addf %16, %17 : vector<32x256xf32>
    %cst_15 = arith.constant 0.000000e+00 : f32
    %19 = vector.broadcast %cst_15 : f32 to vector<32x256xf32>
    %20 = arith.maximumf %18, %19 : vector<32x256xf32>
    %c1 = arith.constant 1 : index
    %c0_16 = arith.constant 0 : index
    %c0_17 = arith.constant 0 : index
    %21 = vector.load %arg6[%c1, %c0_16, %c0_17] : memref<4x32x32xbf16, #tpu.memory_space<vmem>>, vector<1x32x32xbf16>
    %22 = vector.shape_cast %21 : vector<1x32x32xbf16> to vector<32x32xbf16>
    %23 = arith.truncf %20 : vector<32x256xf32> to vector<32x256xbf16>
    %cst_18 = arith.constant dense<0.000000e+00> : vector<32x256xf32>
    %24 = tpu.matmul %22, %23, %cst_18 {dimension_numbers = #tpu.dot_dimension_numbers<[1], [0], [0], [1], [0, 0, 1, 1], [], []>} : vector<32x32xbf16>, vector<32x256xbf16>, vector<32x256xf32> -> vector<32x256xf32>
    %25 = vector.extract_strided_slice %9 {offsets = [64, 0], sizes = [32, 256], strides = [1, 1]} : vector<192x256xf32> to vector<32x256xf32>
    %26 = arith.addf %24, %25 : vector<32x256xf32>
    %cst_19 = arith.constant 0.000000e+00 : f32
    %27 = vector.broadcast %cst_19 : f32 to vector<32x256xf32>
    %28 = arith.maximumf %26, %27 : vector<32x256xf32>
    %c2 = arith.constant 2 : index
    %c0_20 = arith.constant 0 : index
    %c0_21 = arith.constant 0 : index
    %29 = vector.load %arg6[%c2, %c0_20, %c0_21] : memref<4x32x32xbf16, #tpu.memory_space<vmem>>, vector<1x32x32xbf16>
    %30 = vector.shape_cast %29 : vector<1x32x32xbf16> to vector<32x32xbf16>
    %31 = arith.truncf %28 : vector<32x256xf32> to vector<32x256xbf16>
    %cst_22 = arith.constant dense<0.000000e+00> : vector<32x256xf32>
    %32 = tpu.matmul %30, %31, %cst_22 {dimension_numbers = #tpu.dot_dimension_numbers<[1], [0], [0], [1], [0, 0, 1, 1], [], []>} : vector<32x32xbf16>, vector<32x256xbf16>, vector<32x256xf32> -> vector<32x256xf32>
    %33 = vector.extract_strided_slice %9 {offsets = [96, 0], sizes = [32, 256], strides = [1, 1]} : vector<192x256xf32> to vector<32x256xf32>
    %34 = arith.addf %32, %33 : vector<32x256xf32>
    %cst_23 = arith.constant 0.000000e+00 : f32
    %35 = vector.broadcast %cst_23 : f32 to vector<32x256xf32>
    %36 = arith.maximumf %34, %35 : vector<32x256xf32>
    %c3 = arith.constant 3 : index
    %c0_24 = arith.constant 0 : index
    %c0_25 = arith.constant 0 : index
    %37 = vector.load %arg6[%c3, %c0_24, %c0_25] : memref<4x32x32xbf16, #tpu.memory_space<vmem>>, vector<1x32x32xbf16>
    %38 = vector.shape_cast %37 : vector<1x32x32xbf16> to vector<32x32xbf16>
    %39 = arith.truncf %36 : vector<32x256xf32> to vector<32x256xbf16>
    %cst_26 = arith.constant dense<0.000000e+00> : vector<32x256xf32>
    %40 = tpu.matmul %38, %39, %cst_26 {dimension_numbers = #tpu.dot_dimension_numbers<[1], [0], [0], [1], [0, 0, 1, 1], [], []>} : vector<32x32xbf16>, vector<32x256xbf16>, vector<32x256xf32> -> vector<32x256xf32>
    %41 = vector.extract_strided_slice %9 {offsets = [128, 0], sizes = [32, 256], strides = [1, 1]} : vector<192x256xf32> to vector<32x256xf32>
    %42 = arith.addf %40, %41 : vector<32x256xf32>
    %43 = vector.extract_strided_slice %9 {offsets = [160, 0], sizes = [32, 256], strides = [1, 1]} : vector<192x256xf32> to vector<32x256xf32>
    %44 = arith.addf %42, %43 : vector<32x256xf32>
    %cst_27 = arith.constant 0.000000e+00 : f32
    %45 = vector.broadcast %cst_27 : f32 to vector<32x256xf32>
    %46 = arith.maximumf %44, %45 : vector<32x256xf32>
    %c0_28 = arith.constant 0 : index
    %c0_29 = arith.constant 0 : index
    %47 = vector.load %arg7[%c0_28, %c0_29] : memref<32x256xf32, #tpu.memory_space<vmem>>, vector<32x256xf32>
    tpu.vector_store %arg7[%c0_28, %c0_29], %46 {strides = array<i32>} : memref<32x256xf32, #tpu.memory_space<vmem>>, vector<32x256xf32>,
    return
  }
  func.func @transform_0(%arg0: i32) -> (i32, i32) {
    %c0_i32 = arith.constant 0 : i32
    %c0_i32_0 = arith.constant 0 : i32
    return %c0_i32, %arg0 : i32, i32
  }
  func.func @transform_1(%arg0: i32) -> (i32, i32) {
    %c0_i32 = arith.constant 0 : i32
    %c0_i32_0 = arith.constant 0 : i32
    return %c0_i32, %arg0 : i32, i32
  }
  func.func @transform_2(%arg0: i32) -> (i32, i32) {
    %c0_i32 = arith.constant 0 : i32
    %c0_i32_0 = arith.constant 0 : i32
    %c0_i32_1 = arith.constant 0 : i32
    return %c0_i32, %c0_i32_0 : i32, i32
  }
  func.func @transform_3(%arg0: i32) -> (i32, i32) {
    %c0_i32 = arith.constant 0 : i32
    %c0_i32_0 = arith.constant 0 : i32
    %c0_i32_1 = arith.constant 0 : i32
    return %c0_i32, %c0_i32_0 : i32, i32
  }
  func.func @transform_4(%arg0: i32) -> (i32, i32) {
    %c0_i32 = arith.constant 0 : i32
    %c0_i32_0 = arith.constant 0 : i32
    %c0_i32_1 = arith.constant 0 : i32
    return %c0_i32, %c0_i32_0 : i32, i32
  }
  func.func @transform_5(%arg0: i32) -> (i32, i32, i32) {
    %c0_i32 = arith.constant 0 : i32
    %c0_i32_0 = arith.constant 0 : i32
    %c0_i32_1 = arith.constant 0 : i32
    %c0_i32_2 = arith.constant 0 : i32
    return %c0_i32, %c0_i32_0, %c0_i32_1 : i32, i32, i32
  }
  func.func @transform_6(%arg0: i32) -> (i32, i32) {
    %c0_i32 = arith.constant 0 : i32
    %c0_i32_0 = arith.constant 0 : i32
    return %c0_i32, %arg0 : i32, i32
  }
}

</mosaic_0001>

<llo_original>
// kernel: tpu_custom_call.1
$region0: #{tpu_custom_call.1}
  #allocation0 [shape = 'u32[]', space=smem, size = 0x4, offset = 0x4, fixed_abs, tag = 'smem constant byte address 0x4 - core index']
  #allocation1 [shape = 'u32[144,128]{1,0:T(1,128)}', space=vmem, size = 0x12000, scoped, tag = 'internal scratch']
  %s0 = inlined_call_operand.vmem [shape: bf16[16,512], index: 0, kind: input, shape index: {}]
  %s1 = inlined_call_operand.vmem [shape: bf16[16,512], index: 1, kind: input, shape index: {}]
  %s2 = inlined_call_operand.vmem [shape: bf16[192,16], index: 2, kind: input, shape index: {}]
  %s3 = inlined_call_operand.vmem [shape: bf16[192,16], index: 3, kind: input, shape index: {}]
  %s4 = inlined_call_operand.vmem [shape: f32[192,1], index: 4, kind: input, shape index: {}]
  %s5 = inlined_call_operand.vmem [shape: bf16[4,32,32], index: 5, kind: input, shape index: {}]
  %s6 = inlined_call_operand.hbm [shape: f32[32,512], index: 6, kind: output, shape index: {}]
  %s7 = sld [smem:[#allocation0]]
  $region133: #{tpu_custom_call.1} parent=0
    _
  %s9 = ssub.s32 1, %s7
  %s10 = scalar_select 0, %s9, %s7
  $region1: #{tpu_custom_call.1} parent=0
    #allocation2 [shape = 'u8[16384]{0}', space=vmem, size = 0x4000, scoped, tag = 'input window, operand 0']
    #allocation3 [shape = 'u8[16384]{0}', space=vmem, size = 0x4000, scoped, tag = 'input window, operand 1']
    #allocation4 [shape = 'u8[65536]{0}', space=vmem, size = 0x10000, scoped, tag = 'output window, operand 0']
    #allocation5 [shape = 's32[2]{0}', space=sflag, size = 0x8, scoped, tag = 'scoped memory for tpu_custom_call.1']
    %11 = vsyncpa [#allocation5], 0
    %s12 = scalar_lea.sflag [#allocation5], 1
    %13 = vsyncpa %s12, 0
    loop: start=0, step=1, limit=4
    $region2: #{tpu_custom_call.1} parent=1 // loop_pre_header
      _
    $region3: #{tpu_custom_call.1} parent=1 // loop_header
      %s15 = sphi 0, %s19
      %p16 = scmp.ge.s32.totalorder %s15, 4
      %s25 = sphi 0, %s27
      %s28 = sphi 0, %s25
      %s29 = sphi 0, %s28
      %s45 = sphi 0, %s29
      %s51 = sphi 0, %s53
      %s54 = sphi 0, %s51
      %s55 = sphi 0, %s54
      %s71 = sphi 0, %s55
      %s75 = sphi 0, %s75
      %s77 = sphi 0, %s75
      %s78 = sphi 0, %s77
      %s92 = sphi 0, %s78
      %s96 = sphi 0, %s96
      %s98 = sphi 0, %s96
      %s99 = sphi 0, %s98
      %s113 = sphi 0, %s99
      %s117 = sphi 0, %s117
      %s119 = sphi 0, %s117
      %s120 = sphi 0, %s119
      %s134 = sphi 0, %s120
      %s138 = sphi 0, %s138
      %s140 = sphi 0, %s138
      %s141 = sphi 0, %s140
      %s155 = sphi 0, %s141
      %s161 = sphi 0, %s163
      %s164 = sphi 0, %s161
      %s165 = sphi 0, %s164
      %s181 = sphi 0, %s165
    $region4: #{tpu_custom_call.1} parent=1 // loop_header_branch
      %18 = sbr.rel (%p16) target = $region8
    $region5: #{tpu_custom_call.1} parent=1 // loop_body
      %s20 = ssub.s32 %s15, 1
      %s21 = ssub.s32 %s15, 2
      %s22 = sadd.s32 %s15, 1
      %s23 = ssub.s32 %s15, %s22
      %p24 = scmp.eq.s32.totalorder %s23, 0
      %s26 = sadd.s32 %s25, 1
      %s27 = scalar_select %p24, %s25, %s26
      %p30 = pneg %p24
      %p31 = scmp.eq.s32.totalorder %s15, 1
      %p32 = por %p30, %p31
      %p33 = scmp.ne.s32.totalorder %s25, %s28
      %p34 = scmp.eq.s32.totalorder %s15, 0
      %p35 = por %p33, %p34
      %p36 = scmp.ne.s32.totalorder %s25, %s28
      %p37 = scmp.eq.s32.totalorder %s20, 1
      %p38 = por %p36, %p37
      %p39 = scmp.ne.s32.totalorder %s28, %s29
      %p40 = scmp.eq.s32.totalorder %s20, 0
      %p41 = por %p39, %p40
      %p42 = scmp.ne.s32.totalorder %s28, %s29
      %p43 = scmp.eq.s32.totalorder %s21, 1
      %p44 = por %p42, %p43
      %p46 = scmp.ne.s32.totalorder %s29, %s45
      %p47 = scmp.eq.s32.totalorder %s21, 0
      %p48 = por %p46, %p47
      %s49 = ssub.s32 %s15, %s22
      %p50 = scmp.eq.s32.totalorder %s49, 0
      %s52 = sadd.s32 %s51, 1
      %s53 = scalar_select %p50, %s51, %s52
      %p56 = pneg %p50
      %p57 = scmp.eq.s32.totalorder %s15, 1
      %p58 = por %p56, %p57
      %p59 = scmp.ne.s32.totalorder %s51, %s54
      %p60 = scmp.eq.s32.totalorder %s15, 0
      %p61 = por %p59, %p60
      %p62 = scmp.ne.s32.totalorder %s51, %s54
      %p63 = scmp.eq.s32.totalorder %s20, 1
      %p64 = por %p62, %p63
      %p65 = scmp.ne.s32.totalorder %s54, %s55
      %p66 = scmp.eq.s32.totalorder %s20, 0
      %p67 = por %p65, %p66
      %p68 = scmp.ne.s32.totalorder %s54, %s55
      %p69 = scmp.eq.s32.totalorder %s21, 1
      %p70 = por %p68, %p69
      %p72 = scmp.ne.s32.totalorder %s55, %s71
      %p73 = scmp.eq.s32.totalorder %s21, 0
      %p74 = por %p72, %p73
      %s76 = sadd.s32 %s75, 1
      %p79 = scmp.eq.s32.totalorder %s15, 1
      %p80 = scmp.ne.s32.totalorder %s75, %s77
      %p81 = scmp.eq.s32.totalorder %s15, 0
      %p82 = por %p80, %p81
      %p83 = scmp.ne.s32.totalorder %s75, %s77
      %p84 = scmp.eq.s32.totalorder %s20, 1
      %p85 = por %p83, %p84
      %p86 = scmp.ne.s32.totalorder %s77, %s78
      %p87 = scmp.eq.s32.totalorder %s20, 0
      %p88 = por %p86, %p87
      %p89 = scmp.ne.s32.totalorder %s77, %s78
      %p90 = scmp.eq.s32.totalorder %s21, 1
      %p91 = por %p89, %p90
      %p93 = scmp.ne.s32.totalorder %s78, %s92
      %p94 = scmp.eq.s32.totalorder %s21, 0
      %p95 = por %p93, %p94
      %s97 = sadd.s32 %s96, 1
      %p100 = scmp.eq.s32.totalorder %s15, 1
      %p101 = scmp.ne.s32.totalorder %s96, %s98
      %p102 = scmp.eq.s32.totalorder %s15, 0
      %p103 = por %p101, %p102
      %p104 = scmp.ne.s32.totalorder %s96, %s98
      %p105 = scmp.eq.s32.totalorder %s20, 1
      %p106 = por %p104, %p105
      %p107 = scmp.ne.s32.totalorder %s98, %s99
      %p108 = scmp.eq.s32.totalorder %s20, 0
      %p109 = por %p107, %p108
      %p110 = scmp.ne.s32.totalorder %s98, %s99
      %p111 = scmp.eq.s32.totalorder %s21, 1
      %p112 = por %p110, %p111
      %p114 = scmp.ne.s32.totalorder %s99, %s113
      %p115 = scmp.eq.s32.totalorder %s21, 0
      %p116 = por %p114, %p115
      %s118 = sadd.s32 %s117, 1
      %p121 = scmp.eq.s32.totalorder %s15, 1
      %p122 = scmp.ne.s32.totalorder %s117, %s119
      %p123 = scmp.eq.s32.totalorder %s15, 0
      %p124 = por %p122, %p123
      %p125 = scmp.ne.s32.totalorder %s117, %s119
      %p126 = scmp.eq.s32.totalorder %s20, 1
      %p127 = por %p125, %p126
      %p128 = scmp.ne.s32.totalorder %s119, %s120
      %p129 = scmp.eq.s32.totalorder %s20, 0
      %p130 = por %p128, %p129
      %p131 = scmp.ne.s32.totalorder %s119, %s120
      %p132 = scmp.eq.s32.totalorder %s21, 1
      %p133 = por %p131, %p132
      %p135 = scmp.ne.s32.totalorder %s120, %s134
      %p136 = scmp.eq.s32.totalorder %s21, 0
      %p137 = por %p135, %p136
      %s139 = sadd.s32 %s138, 1
      %p142 = scmp.eq.s32.totalorder %s15, 1
      %p143 = scmp.ne.s32.totalorder %s138, %s140
      %p144 = scmp.eq.s32.totalorder %s15, 0
      %p145 = por %p143, %p144
      %p146 = scmp.ne.s32.totalorder %s138, %s140
      %p147 = scmp.eq.s32.totalorder %s20, 1
      %p148 = por %p146, %p147
      %p149 = scmp.ne.s32.totalorder %s140, %s141
      %p150 = scmp.eq.s32.totalorder %s20, 0
      %p151 = por %p149, %p150
      %p152 = scmp.ne.s32.totalorder %s140, %s141
      %p153 = scmp.eq.s32.totalorder %s21, 1
      %p154 = por %p152, %p153
      %p156 = scmp.ne.s32.totalorder %s141, %s155
      %p157 = scmp.eq.s32.totalorder %s21, 0
      %p158 = por %p156, %p157
      %s159 = ssub.s32 %s15, %s22
      %p160 = scmp.eq.s32.totalorder %s159, 0
      %s162 = sadd.s32 %s161, 1
      %s163 = scalar_select %p160, %s161, %s162
      %p166 = pneg %p160
      %p167 = scmp.eq.s32.totalorder %s15, 1
      %p168 = por %p166, %p167
      %p169 = scmp.ne.s32.totalorder %s161, %s164
      %p170 = scmp.eq.s32.totalorder %s15, 0
      %p171 = por %p169, %p170
      %p172 = scmp.ne.s32.totalorder %s161, %s164
      %p173 = scmp.eq.s32.totalorder %s20, 1
      %p174 = por %p172, %p173
      %p175 = scmp.ne.s32.totalorder %s164, %s165
      %p176 = scmp.eq.s32.totalorder %s20, 0
      %p177 = por %p175, %p176
      %p178 = scmp.ne.s32.totalorder %s164, %s165
      %p179 = scmp.eq.s32.totalorder %s21, 1
      %p180 = por %p178, %p179
      %p182 = scmp.ne.s32.totalorder %s165, %s181
      %p183 = scmp.eq.s32.totalorder %s21, 0
      %p184 = por %p182, %p183
      %p185 = scmp.le.s32.totalorder 1, %s15
      %p186 = scmp.lt.s32.totalorder %s15, 3
      %p187 = pnand %p185, %p186
      %p188 = pneg %p187
      // Predicated region
      $region9: #{tpu_custom_call.1} parent=5 // pred_check
        _
      $region10: #{tpu_custom_call.1} parent=5 // pred_check_branch
        %190 = sbr.rel (%p187) target = $region12
      $region11: #{tpu_custom_call.1} parent=5 // pred_region
        %s191 = ssub.s32 %s15, 1
        // Predicated region
        $region13: #{tpu_custom_call.1} parent=11 // pred_check
          %p192 = pneg %p88
        $region14: #{tpu_custom_call.1} parent=11 // pred_check_branch
          %194 = sbr.rel (%p192) target = $region16
        $region15: #{tpu_custom_call.1} parent=11 // pred_region
          _
        $region16: #{tpu_custom_call.1} parent=11 // pred_fallthru
          _
        // Predicated region
        $region17: #{tpu_custom_call.1} parent=11 // pred_check
          %p195 = pneg %p109
        $region18: #{tpu_custom_call.1} parent=11 // pred_check_branch
          %197 = sbr.rel (%p195) target = $region20
        $region19: #{tpu_custom_call.1} parent=11 // pred_region
          _
        $region20: #{tpu_custom_call.1} parent=11 // pred_fallthru
          _
        // Predicated region
        $region21: #{tpu_custom_call.1} parent=11 // pred_check
          %p198 = pneg %p130
        $region22: #{tpu_custom_call.1} parent=11 // pred_check_branch
          %200 = sbr.rel (%p198) target = $region24
        $region23: #{tpu_custom_call.1} parent=11 // pred_region
          _
        $region24: #{tpu_custom_call.1} parent=11 // pred_fallthru
          _
        // Predicated region
        $region25: #{tpu_custom_call.1} parent=11 // pred_check
          %p201 = pneg %p151
        $region26: #{tpu_custom_call.1} parent=11 // pred_check_branch
          %203 = sbr.rel (%p201) target = $region28
        $region27: #{tpu_custom_call.1} parent=11 // pred_region
          _
        $region28: #{tpu_custom_call.1} parent=11 // pred_fallthru
          _
      $region12: #{tpu_custom_call.1} parent=5 // pred_fallthru
        _
      %p204 = scmp.lt.s32.totalorder %s15, 2
      // Predicated region
      $region29: #{tpu_custom_call.1} parent=5 // pred_check
        %p205 = pneg %p204
      $region30: #{tpu_custom_call.1} parent=5 // pred_check_branch
        %207 = sbr.rel (%p205) target = $region32
      $region31: #{tpu_custom_call.1} parent=5 // pred_region
        // Predicated region
        $region33: #{tpu_custom_call.1} parent=31 // pred_check
          %p208 = pneg %p35
        $region34: #{tpu_custom_call.1} parent=31 // pred_check_branch
          %210 = sbr.rel (%p208) target = $region36
        $region35: #{tpu_custom_call.1} parent=31 // pred_region
          %s211 = sand.u32 %s25, 1
          %s212 = sand.u32 %s25, 1
          %s213 = smul.addr %s212, 16
          %s214 = scalar_lea.vmem [#allocation2], %s213
          %s215 = smul.u32 2, %s15
          %s216 = smul.addr %s215, 4
          %s217 = scalar_lea.vmem %s0, %s216
          // Predicated region
          $region37: #{tpu_custom_call.1} parent=35 // pred_check
            _
          $region38: #{tpu_custom_call.1} parent=35 // pred_check_branch
            %219 = sbr.rel (0) target = $region40
          $region39: #{tpu_custom_call.1} parent=35 // pred_region
            // Predicated region
            $region41: #{tpu_custom_call.1} parent=39 // pred_check
              _
            $region42: #{tpu_custom_call.1} parent=39 // pred_check_branch
              %221 = sbr.rel (0) target = $region44
            $region43: #{tpu_custom_call.1} parent=39 // pred_region
              // Predicated region
              $region56: #{tpu_custom_call.1} parent=43 // pred_check
                _
              $region57: #{tpu_custom_call.1} parent=43 // pred_check_branch
                %238 = sbr.rel (0) target = $region59
              $region58: #{tpu_custom_call.1} parent=43 // pred_region
                loop: start=0, step=1, limit=1
                $region60: #{tpu_custom_call.1} parent=58 // loop_pre_header
                  _
                $region61: #{tpu_custom_call.1} parent=58 // loop_header
                  %s240 = sphi 0, %s244
                  %p241 = scmp.ge.s32.totalorder %s240, 1
                  %s245 = sphi %s217, %s217
                  %s246 = sphi %s214, %s214
                $region62: #{tpu_custom_call.1} parent=58 // loop_header_branch
                  %243 = sbr.rel (%p241) target = $region66
                $region63: #{tpu_custom_call.1} parent=58 // loop_body
                  %v247 = vld [vmem:[%s245] sm:$0xff]
                  %248 = vst [vmem:[%s246] sm:$0xff] %v247
                  %v249 = vld [vmem:[%s245 + $0x10] sm:$0xff]
                  %250 = vst [vmem:[%s246 + $0x8] sm:$0xff] %v249
                $region64: #{tpu_custom_call.1} parent=58 // loop_footer
                  %s244 = sadd.s32 1, %s240
                $region65: #{tpu_custom_call.1} parent=58 // loop_footer_branch
                  %239 = sbr.rel target = $region61
                $region66: #{tpu_custom_call.1} parent=58 // loop_exit
                  _
              $region59: #{tpu_custom_call.1} parent=43 // pred_fallthru
                _
              // Predicated region
              $region67: #{tpu_custom_call.1} parent=43 // pred_check
                _
              $region68: #{tpu_custom_call.1} parent=43 // pred_check_branch
                %252 = sbr.rel target = $region70
              $region69: #{tpu_custom_call.1} parent=43 // pred_region
                _
              $region70: #{tpu_custom_call.1} parent=43 // pred_fallthru
                _
            $region44: #{tpu_custom_call.1} parent=39 // pred_fallthru
              _
            // Predicated region
            $region45: #{tpu_custom_call.1} parent=39 // pred_check
              _
            $region46: #{tpu_custom_call.1} parent=39 // pred_check_branch
              %223 = sbr.rel target = $region48
            $region47: #{tpu_custom_call.1} parent=39 // pred_region
              loop: start=0, step=1, limit=1
              $region49: #{tpu_custom_call.1} parent=47 // loop_pre_header
                _
              $region50: #{tpu_custom_call.1} parent=47 // loop_header
                %s226 = sphi 0, %s230
                %p227 = scmp.ge.s32.totalorder %s226, 1
                %s231 = sphi %s217, %s217
                %s232 = sphi %s214, %s214
              $region51: #{tpu_custom_call.1} parent=47 // loop_header_branch
                %229 = sbr.rel (%p227) target = $region55
              $region52: #{tpu_custom_call.1} parent=47 // loop_body
                %v233 = vld [vmem:[%s231] sm:$0xff]
                %234 = vst [vmem:[%s232] sm:$0xff] %v233
                %v235 = vld [vmem:[%s231 + $0x10] sm:$0xff]
                %236 = vst [vmem:[%s232 + $0x8] sm:$0xff] %v235
              $region53: #{tpu_custom_call.1} parent=47 // loop_footer
                %s230 = sadd.s32 1, %s226
              $region54: #{tpu_custom_call.1} parent=47 // loop_footer_branch
                %225 = sbr.rel target = $region50
              $region55: #{tpu_custom_call.1} parent=47 // loop_exit
                _
            $region48: #{tpu_custom_call.1} parent=39 // pred_fallthru
              _
          $region40: #{tpu_custom_call.1} parent=35 // pred_fallthru
            _
          %253 = vnop
        $region36: #{tpu_custom_call.1} parent=31 // pred_fallthru
          _
        // Predicated region
        $region71: #{tpu_custom_call.1} parent=31 // pred_check
          %p254 = pneg %p61
        $region72: #{tpu_custom_call.1} parent=31 // pred_check_branch
          %256 = sbr.rel (%p254) target = $region74
        $region73: #{tpu_custom_call.1} parent=31 // pred_region
          %s257 = sand.u32 %s51, 1
          %s258 = sand.u32 %s51, 1
          %s259 = smul.addr %s258, 16
          %s260 = scalar_lea.vmem [#allocation3], %s259
          %s261 = smul.u32 2, %s15
          %s262 = smul.addr %s261, 4
          %s263 = scalar_lea.vmem %s1, %s262
          // Predicated region
          $region75: #{tpu_custom_call.1} parent=73 // pred_check
            _
          $region76: #{tpu_custom_call.1} parent=73 // pred_check_branch
            %265 = sbr.rel (0) target = $region78
          $region77: #{tpu_custom_call.1} parent=73 // pred_region
            // Predicated region
            $region79: #{tpu_custom_call.1} parent=77 // pred_check
              _
            $region80: #{tpu_custom_call.1} parent=77 // pred_check_branch
              %267 = sbr.rel (0) target = $region82
            $region81: #{tpu_custom_call.1} parent=77 // pred_region
              // Predicated region
              $region94: #{tpu_custom_call.1} parent=81 // pred_check
                _
              $region95: #{tpu_custom_call.1} parent=81 // pred_check_branch
                %284 = sbr.rel (0) target = $region97
              $region96: #{tpu_custom_call.1} parent=81 // pred_region
                loop: start=0, step=1, limit=1
                $region98: #{tpu_custom_call.1} parent=96 // loop_pre_header
                  _
                $region99: #{tpu_custom_call.1} parent=96 // loop_header
                  %s286 = sphi 0, %s290
                  %p287 = scmp.ge.s32.totalorder %s286, 1
                  %s291 = sphi %s263, %s263
                  %s292 = sphi %s260, %s260
                $region100: #{tpu_custom_call.1} parent=96 // loop_header_branch
                  %289 = sbr.rel (%p287) target = $region104
                $region101: #{tpu_custom_call.1} parent=96 // loop_body
                  %v293 = vld [vmem:[%s291] sm:$0xff]
                  %294 = vst [vmem:[%s292] sm:$0xff] %v293
                  %v295 = vld [vmem:[%s291 + $0x10] sm:$0xff]
                  %296 = vst [vmem:[%s292 + $0x8] sm:$0xff] %v295
                $region102: #{tpu_custom_call.1} parent=96 // loop_footer
                  %s290 = sadd.s32 1, %s286
                $region103: #{tpu_custom_call.1} parent=96 // loop_footer_branch
                  %285 = sbr.rel target = $region99
                $region104: #{tpu_custom_call.1} parent=96 // loop_exit
                  _
              $region97: #{tpu_custom_call.1} parent=81 // pred_fallthru
                _
              // Predicated region
              $region105: #{tpu_custom_call.1} parent=81 // pred_check
                _
              $region106: #{tpu_custom_call.1} parent=81 // pred_check_branch
                %298 = sbr.rel target = $region108
              $region107: #{tpu_custom_call.1} parent=81 // pred_region
                _
              $region108: #{tpu_custom_call.1} parent=81 // pred_fallthru
                _
            $region82: #{tpu_custom_call.1} parent=77 // pred_fallthru
              _
            // Predicated region
            $region83: #{tpu_custom_call.1} parent=77 // pred_check
              _
            $region84: #{tpu_custom_call.1} parent=77 // pred_check_branch
              %269 = sbr.rel target = $region86
            $region85: #{tpu_custom_call.1} parent=77 // pred_region
              loop: start=0, step=1, limit=1
              $region87: #{tpu_custom_call.1} parent=85 // loop_pre_header
                _
              $region88: #{tpu_custom_call.1} parent=85 // loop_header
                %s272 = sphi 0, %s276
                %p273 = scmp.ge.s32.totalorder %s272, 1
                %s277 = sphi %s263, %s263
                %s278 = sphi %s260, %s260
              $region89: #{tpu_custom_call.1} parent=85 // loop_header_branch
                %275 = sbr.rel (%p273) target = $region93
              $region90: #{tpu_custom_call.1} parent=85 // loop_body
                %v279 = vld [vmem:[%s277] sm:$0xff]
                %280 = vst [vmem:[%s278] sm:$0xff] %v279
                %v281 = vld [vmem:[%s277 + $0x10] sm:$0xff]
                %282 = vst [vmem:[%s278 + $0x8] sm:$0xff] %v281
              $region91: #{tpu_custom_call.1} parent=85 // loop_footer
                %s276 = sadd.s32 1, %s272
              $region92: #{tpu_custom_call.1} parent=85 // loop_footer_branch
                %271 = sbr.rel target = $region88
              $region93: #{tpu_custom_call.1} parent=85 // loop_exit
                _
            $region86: #{tpu_custom_call.1} parent=77 // pred_fallthru
              _
          $region78: #{tpu_custom_call.1} parent=73 // pred_fallthru
            _
          %299 = vnop
        $region74: #{tpu_custom_call.1} parent=31 // pred_fallthru
          _
      $region32: #{tpu_custom_call.1} parent=5 // pred_fallthru
        _
      %p300 = scmp.le.s32.totalorder 1, %s15
      %p301 = scmp.lt.s32.totalorder %s15, 3
      %p302 = pnand %p300, %p301
      %p303 = pneg %p302
      // Predicated region
      $region109: #{tpu_custom_call.1} parent=5 // pred_check
        _
      $region110: #{tpu_custom_call.1} parent=5 // pred_check_branch
        %305 = sbr.rel (%p302) target = $region112
      $region111: #{tpu_custom_call.1} parent=5 // pred_region
        %s306 = ssub.s32 %s15, 1
        %s307 = sand.u32 %s28, 1
        %s308 = sand.u32 %s28, 1
        %s309 = smul.addr %s308, 16
        %s310 = scalar_lea.vmem [#allocation2], %s309
        // Predicated region
        $region113: #{tpu_custom_call.1} parent=111 // pred_check
          %p311 = pneg %p41
        $region114: #{tpu_custom_call.1} parent=111 // pred_check_branch
          %313 = sbr.rel (%p311) target = $region116
        $region115: #{tpu_custom_call.1} parent=111 // pred_region
          _
        $region116: #{tpu_custom_call.1} parent=111 // pred_fallthru
          _
        %s314 = sand.u32 %s54, 1
        %s315 = sand.u32 %s54, 1
        %s316 = smul.addr %s315, 16
        %s317 = scalar_lea.vmem [#allocation3], %s316
        // Predicated region
        $region117: #{tpu_custom_call.1} parent=111 // pred_check
          %p318 = pneg %p67
        $region118: #{tpu_custom_call.1} parent=111 // pred_check_branch
          %320 = sbr.rel (%p318) target = $region120
        $region119: #{tpu_custom_call.1} parent=111 // pred_region
          _
        $region120: #{tpu_custom_call.1} parent=111 // pred_fallthru
          _
        %s321 = sand.u32 %s28, 1
        %s322 = sand.u32 %s28, 1
        %s323 = smul.addr %s322, 16
        %s324 = scalar_lea.vmem [#allocation2], %s323
        %p325 = pneg %p41
        %p326 = pneg %p38
        %s327 = sand.u32 %s54, 1
        %s328 = sand.u32 %s54, 1
        %s329 = smul.addr %s328, 16
        %s330 = scalar_lea.vmem [#allocation3], %s329
        %p331 = pneg %p67
        %p332 = pneg %p64
        %p333 = pneg %p88
        %p334 = pneg %p85
        %p335 = pneg %p109
        %p336 = pneg %p106
        %p337 = pneg %p130
        %p338 = pneg %p127
        %p339 = pneg %p151
        %p340 = pneg %p148
        %p341 = pneg %p177
        %p342 = pneg %p174
        %s343 = sand.u32 %s164, 1
        %s344 = scalar_lea.sflag [#allocation5], %s343
        %s345 = sand.u32 %s164, 1
        %s346 = smul.addr %s345, 64
        %s347 = scalar_lea.vmem [#allocation4], %s346
        %s348 = smul.u32 2, %s20
        %s349 = smul.u32 2, %s20
        %s350 = smul.u32 2, %s20
        %v352 = vld [vmem:[%s2] sm:$0xf]
        %v353 = vld [vmem:[%s2 + $0x4] sm:$0xf]
        %v354 = vld [vmem:[%s2 + $0x8] sm:$0xf]
        %v355 = vld [vmem:[%s2 + $0xc] sm:$0xf]
        %v356 = vld [vmem:[%s2 + $0x10] sm:$0xf]
        %v357 = vld [vmem:[%s2 + $0x14] sm:$0xf]
        %v358 = vld [vmem:[%s2 + $0x18] sm:$0xf]
        %v359 = vld [vmem:[%s2 + $0x1c] sm:$0xf]
        %v360 = vld [vmem:[%s2 + $0x20] sm:$0xf]
        %v361 = vld [vmem:[%s2 + $0x24] sm:$0xf]
        %v362 = vld [vmem:[%s2 + $0x28] sm:$0xf]
        %v363 = vld [vmem:[%s2 + $0x2c] sm:$0xf]
        %v364 = vld [vmem:[%s2 + $0x30] sm:$0xf]
        %v365 = vld [vmem:[%s2 + $0x34] sm:$0xf]
        %v366 = vld [vmem:[%s2 + $0x38] sm:$0xf]
        %v367 = vld [vmem:[%s2 + $0x3c] sm:$0xf]
        %v368 = vld [vmem:[%s2 + $0x40] sm:$0xf]
        %v369 = vld [vmem:[%s2 + $0x44] sm:$0xf]
        %v370 = vld [vmem:[%s2 + $0x48] sm:$0xf]
        %v371 = vld [vmem:[%s2 + $0x4c] sm:$0xf]
        %v372 = vld [vmem:[%s2 + $0x50] sm:$0xf]
        %v373 = vld [vmem:[%s2 + $0x54] sm:$0xf]
        %v374 = vld [vmem:[%s2 + $0x58] sm:$0xf]
        %v375 = vld [vmem:[%s2 + $0x5c] sm:$0xf]
        %v376 = vld [vmem:[%s310] sm:$0xff]
        %v377 = vld [vmem:[%s310 + $0x8] sm:$0xff]
        %v378 = vld [vmem:[%s3] sm:$0xf]
        %v379 = vld [vmem:[%s3 + $0x4] sm:$0xf]
        %v380 = vld [vmem:[%s3 + $0x8] sm:$0xf]
        %v381 = vld [vmem:[%s3 + $0xc] sm:$0xf]
        %v382 = vld [vmem:[%s3 + $0x10] sm:$0xf]
        %v383 = vld [vmem:[%s3 + $0x14] sm:$0xf]
        %v384 = vld [vmem:[%s3 + $0x18] sm:$0xf]
        %v385 = vld [vmem:[%s3 + $0x1c] sm:$0xf]
        %v386 = vld [vmem:[%s3 + $0x20] sm:$0xf]
        %v387 = vld [vmem:[%s3 + $0x24] sm:$0xf]
        %v388 = vld [vmem:[%s3 + $0x28] sm:$0xf]
        %v389 = vld [vmem:[%s3 + $0x2c] sm:$0xf]
        %v390 = vld [vmem:[%s3 + $0x30] sm:$0xf]
        %v391 = vld [vmem:[%s3 + $0x34] sm:$0xf]
        %v392 = vld [vmem:[%s3 + $0x38] sm:$0xf]
        %v393 = vld [vmem:[%s3 + $0x3c] sm:$0xf]
        %v394 = vld [vmem:[%s3 + $0x40] sm:$0xf]
        %v395 = vld [vmem:[%s3 + $0x44] sm:$0xf]
        %v396 = vld [vmem:[%s3 + $0x48] sm:$0xf]
        %v397 = vld [vmem:[%s3 + $0x4c] sm:$0xf]
        %v398 = vld [vmem:[%s3 + $0x50] sm:$0xf]
        %v399 = vld [vmem:[%s3 + $0x54] sm:$0xf]
        %v400 = vld [vmem:[%s3 + $0x58] sm:$0xf]
        %v401 = vld [vmem:[%s3 + $0x5c] sm:$0xf]
        %v402 = vld [vmem:[%s317] sm:$0xff]
        %v403 = vld [vmem:[%s317 + $0x8] sm:$0xff]
        %v428 = vunpack.c.l.b16 %v378
        %v429 = vunpack.c.l.b16 %v379
        %v430 = vunpack.c.l.b16 %v380
        %v431 = vunpack.c.l.b16 %v381
        %v432 = vunpack.c.l.b16 %v382
        %v433 = vunpack.c.l.b16 %v383
        %v434 = vunpack.c.l.b16 %v384
        %v435 = vunpack.c.l.b16 %v385
        %v436 = vunpack.c.l.b16 %v386
        %v437 = vunpack.c.l.b16 %v387
        %v438 = vunpack.c.l.b16 %v388
        %v439 = vunpack.c.l.b16 %v389
        %v440 = vunpack.c.l.b16 %v390
        %v441 = vunpack.c.l.b16 %v391
        %v442 = vunpack.c.l.b16 %v392
        %v443 = vunpack.c.l.b16 %v393
        %v444 = vunpack.c.l.b16 %v394
        %v445 = vunpack.c.l.b16 %v395
        %v446 = vunpack.c.l.b16 %v396
        %v447 = vunpack.c.l.b16 %v397
        %v448 = vunpack.c.l.b16 %v398
        %v449 = vunpack.c.l.b16 %v399
        %v450 = vunpack.c.l.b16 %v400
        %v451 = vunpack.c.l.b16 %v401
        %v452 = vpack.c.b16 %v429, %v428
        %v453 = vpack.c.b16 %v431, %v430
        %v454 = vpack.c.b16 %v433, %v432
        %v455 = vpack.c.b16 %v435, %v434
        %v456 = vpack.c.b16 %v437, %v436
        %v457 = vpack.c.b16 %v439, %v438
        %v458 = vpack.c.b16 %v441, %v440
        %v459 = vpack.c.b16 %v443, %v442
        %v460 = vpack.c.b16 %v445, %v444
        %v461 = vpack.c.b16 %v447, %v446
        %v462 = vpack.c.b16 %v449, %v448
        %v463 = vpack.c.b16 %v451, %v450
        %v466 = vunpack.c.l.b16 %v402
        %v467 = vunpack.c.h.b16 %v402
        %v468 = vunpack.c.l.b16 %v403
        %v469 = vunpack.c.h.b16 %v403
        %v470 = vpack.c.b16 %v468, %v466
        %v471 = vpack.c.b16 %v469, %v467
        %vm474 = vcmask 130048
        %v476 = vsel %vm474, %v452, 0
        %v479 = vsel %vm474, %v453, 0
        %v482 = vsel %vm474, %v454, 0
        %v485 = vsel %vm474, %v455, 0
        %v488 = vsel %vm474, %v456, 0
        %v491 = vsel %vm474, %v457, 0
        %v494 = vsel %vm474, %v458, 0
        %v497 = vsel %vm474, %v459, 0
        %v500 = vsel %vm474, %v460, 0
        %v503 = vsel %vm474, %v461, 0
        %v506 = vsel %vm474, %v462, 0
        %v509 = vsel %vm474, %v463, 0
        %511 = vmatprep.subr.bf16.mxu0 %v471
        %512 = vmatpush1.bf16.msra.mxu0 %v470
        %513 = vmatprep.subr.bf16.mxu0 0
        %514 = vmatpush1.bf16.msra.mxu0 0
        %515 = vmatprep.subr.bf16.mxu0 0
        %516 = vmatpush1.bf16.msra.mxu0 0
        %517 = vmatprep.subr.bf16.mxu0 0
        %518 = vmatpush1.bf16.msra.mxu0 0
        %519 = vmatprep.subr.bf16.mxu0 0
        %520 = vmatpush1.bf16.msra.mxu0 0
        %521 = vmatprep.subr.bf16.mxu0 0
        %522 = vmatpush1.bf16.msra.mxu0 0
        %523 = vmatprep.subr.bf16.mxu0 0
        %524 = vmatpush1.bf16.msra.mxu0 0
        %525 = vmatprep.subr.bf16.mxu0 0
        %526 = vmatpush1.bf16.msra.mxu0 0
        %527 = vmatprep.subr.bf16.mxu0 0
        %528 = vmatpush1.bf16.msra.mxu0 0
        %529 = vmatprep.subr.bf16.mxu0 0
        %530 = vmatpush1.bf16.msra.mxu0 0
        %531 = vmatprep.subr.bf16.mxu0 0
        %532 = vmatpush1.bf16.msra.mxu0 0
        %533 = vmatprep.subr.bf16.mxu0 0
        %534 = vmatpush1.bf16.msra.mxu0 0
        %535 = vmatprep.subr.bf16.mxu0 0
        %536 = vmatpush1.bf16.msra.mxu0 0
        %537 = vmatprep.subr.bf16.mxu0 0
        %538 = vmatpush1.bf16.msra.mxu0 0
        %539 = vmatprep.subr.bf16.mxu0 0
        %540 = vmatpush1.bf16.msra.mxu0 0
        %541 = vmatprep.subr.bf16.mxu0 0
        %542 = vmatpush1.bf16.msra.mxu0 0
        %543 = vmatprep.mubr.bf16.mxu0 0
        %544 = vmatmul.mubr.bf16.gmra.mrb[0].mxu0 %v476
        %v545 = vpop.f32.mrb[0].mxu0
        %v546 = vadd.f32 0.0, %v545
        %v547 = vpop.f32.mrb[0].mxu0
        %v548 = vadd.f32 0.0, %v547
        %v549 = vpop.f32.mrb[0].mxu0
        %v550 = vadd.f32 0.0, %v549
        %v551 = vpop.f32.mrb[0].mxu0
        %v552 = vadd.f32 0.0, %v551
        %553 = vmatprep.mubr.bf16.mxu0 0
        %554 = vmatmul.mubr.bf16.gmra.mrb[0].mxu0 %v479
        %v555 = vpop.f32.mrb[0].mxu0
        %v556 = vadd.f32 0.0, %v555
        %v557 = vpop.f32.mrb[0].mxu0
        %v558 = vadd.f32 0.0, %v557
        %v559 = vpop.f32.mrb[0].mxu0
        %v560 = vadd.f32 0.0, %v559
        %v561 = vpop.f32.mrb[0].mxu0
        %v562 = vadd.f32 0.0, %v561
        %563 = vmatprep.mubr.bf16.mxu0 0
        %564 = vmatmul.mubr.bf16.gmra.mrb[0].mxu0 %v482
        %v565 = vpop.f32.mrb[0].mxu0
        %v566 = vadd.f32 0.0, %v565
        %v567 = vpop.f32.mrb[0].mxu0
        %v568 = vadd.f32 0.0, %v567
        %v569 = vpop.f32.mrb[0].mxu0
        %v570 = vadd.f32 0.0, %v569
        %v571 = vpop.f32.mrb[0].mxu0
        %v572 = vadd.f32 0.0, %v571
        %573 = vmatprep.mubr.bf16.mxu0 0
        %574 = vmatmul.mubr.bf16.gmra.mrb[0].mxu0 %v485
        %v575 = vpop.f32.mrb[0].mxu0
        %v576 = vadd.f32 0.0, %v575
        %v577 = vpop.f32.mrb[0].mxu0
        %v578 = vadd.f32 0.0, %v577
        %v579 = vpop.f32.mrb[0].mxu0
        %v580 = vadd.f32 0.0, %v579
        %v581 = vpop.f32.mrb[0].mxu0
        %v582 = vadd.f32 0.0, %v581
        %583 = vmatprep.mubr.bf16.mxu0 0
        %584 = vmatmul.mubr.bf16.gmra.mrb[0].mxu0 %v488
        %v585 = vpop.f32.mrb[0].mxu0
        %v586 = vadd.f32 0.0, %v585
        %v587 = vpop.f32.mrb[0].mxu0
        %v588 = vadd.f32 0.0, %v587
        %v589 = vpop.f32.mrb[0].mxu0
        %v590 = vadd.f32 0.0, %v589
        %v591 = vpop.f32.mrb[0].mxu0
        %v592 = vadd.f32 0.0, %v591
        %593 = vmatprep.mubr.bf16.mxu0 0
        %594 = vmatmul.mubr.bf16.gmra.mrb[0].mxu0 %v491
        %v595 = vpop.f32.mrb[0].mxu0
        %v596 = vadd.f32 0.0, %v595
        %v597 = vpop.f32.mrb[0].mxu0
        %v598 = vadd.f32 0.0, %v597
        %v599 = vpop.f32.mrb[0].mxu0
        %v600 = vadd.f32 0.0, %v599
        %v601 = vpop.f32.mrb[0].mxu0
        %v602 = vadd.f32 0.0, %v601
        %603 = vmatprep.mubr.bf16.mxu0 0
        %604 = vmatmul.mubr.bf16.gmra.mrb[0].mxu0 %v494
        %v605 = vpop.f32.mrb[0].mxu0
        %v606 = vadd.f32 0.0, %v605
        %v607 = vpop.f32.mrb[0].mxu0
        %v608 = vadd.f32 0.0, %v607
        %v609 = vpop.f32.mrb[0].mxu0
        %v610 = vadd.f32 0.0, %v609
        %v611 = vpop.f32.mrb[0].mxu0
        %v612 = vadd.f32 0.0, %v611
        %613 = vmatprep.mubr.bf16.mxu0 0
        %614 = vmatmul.mubr.bf16.gmra.mrb[0].mxu0 %v497
        %v615 = vpop.f32.mrb[0].mxu0
        %v616 = vadd.f32 0.0, %v615
        %v617 = vpop.f32.mrb[0].mxu0
        %v618 = vadd.f32 0.0, %v617
        %v619 = vpop.f32.mrb[0].mxu0
        %v620 = vadd.f32 0.0, %v619
        %v621 = vpop.f32.mrb[0].mxu0
        %v622 = vadd.f32 0.0, %v621
        %623 = vmatprep.mubr.bf16.mxu0 0
        %624 = vmatmul.mubr.bf16.gmra.mrb[0].mxu0 %v500
        %v625 = vpop.f32.mrb[0].mxu0
        %v626 = vadd.f32 0.0, %v625
        %v627 = vpop.f32.mrb[0].mxu0
        %v628 = vadd.f32 0.0, %v627
        %v629 = vpop.f32.mrb[0].mxu0
        %v630 = vadd.f32 0.0, %v629
        %v631 = vpop.f32.mrb[0].mxu0
        %v632 = vadd.f32 0.0, %v631
        %633 = vmatprep.mubr.bf16.mxu0 0
        %634 = vmatmul.mubr.bf16.gmra.mrb[0].mxu0 %v503
        %v635 = vpop.f32.mrb[0].mxu0
        %v636 = vadd.f32 0.0, %v635
        %v637 = vpop.f32.mrb[0].mxu0
        %v638 = vadd.f32 0.0, %v637
        %v639 = vpop.f32.mrb[0].mxu0
        %v640 = vadd.f32 0.0, %v639
        %v641 = vpop.f32.mrb[0].mxu0
        %v642 = vadd.f32 0.0, %v641
        %643 = vmatprep.mubr.bf16.mxu0 0
        %644 = vmatmul.mubr.bf16.gmra.mrb[0].mxu0 %v506
        %v645 = vpop.f32.mrb[0].mxu0
        %v646 = vadd.f32 0.0, %v645
        %v647 = vpop.f32.mrb[0].mxu0
        %v648 = vadd.f32 0.0, %v647
        %v649 = vpop.f32.mrb[0].mxu0
        %v650 = vadd.f32 0.0, %v649
        %v651 = vpop.f32.mrb[0].mxu0
        %v652 = vadd.f32 0.0, %v651
        %653 = vmatprep.mubr.bf16.mxu0 0
        %654 = vmatmul.mubr.bf16.gmra.mrb[0].mxu0 %v509
        %v655 = vpop.f32.mrb[0].mxu0
        %v656 = vadd.f32 0.0, %v655
        %v657 = vpop.f32.mrb[0].mxu0
        %v658 = vadd.f32 0.0, %v657
        %v659 = vpop.f32.mrb[0].mxu0
        %v660 = vadd.f32 0.0, %v659
        %v661 = vpop.f32.mrb[0].mxu0
        %v662 = vadd.f32 0.0, %v661
        %663 = vdwg.mxu0
        %v688 = vunpack.c.l.b16 %v352
        %v689 = vunpack.c.l.b16 %v353
        %v690 = vunpack.c.l.b16 %v354
        %v691 = vunpack.c.l.b16 %v355
        %v692 = vunpack.c.l.b16 %v356
        %v693 = vunpack.c.l.b16 %v357
        %v694 = vunpack.c.l.b16 %v358
        %v695 = vunpack.c.l.b16 %v359
        %v696 = vunpack.c.l.b16 %v360
        %v697 = vunpack.c.l.b16 %v361
        %v698 = vunpack.c.l.b16 %v362
        %v699 = vunpack.c.l.b16 %v363
        %v700 = vunpack.c.l.b16 %v364
        %v701 = vunpack.c.l.b16 %v365
        %v702 = vunpack.c.l.b16 %v366
        %v703 = vunpack.c.l.b16 %v367
        %v704 = vunpack.c.l.b16 %v368
        %v705 = vunpack.c.l.b16 %v369
        %v706 = vunpack.c.l.b16 %v370
        %v707 = vunpack.c.l.b16 %v371
        %v708 = vunpack.c.l.b16 %v372
        %v709 = vunpack.c.l.b16 %v373
        %v710 = vunpack.c.l.b16 %v374
        %v711 = vunpack.c.l.b16 %v375
        %v712 = vpack.c.b16 %v689, %v688
        %v713 = vpack.c.b16 %v691, %v690
        %v714 = vpack.c.b16 %v693, %v692
        %v715 = vpack.c.b16 %v695, %v694
        %v716 = vpack.c.b16 %v697, %v696
        %v717 = vpack.c.b16 %v699, %v698
        %v718 = vpack.c.b16 %v701, %v700
        %v719 = vpack.c.b16 %v703, %v702
        %v720 = vpack.c.b16 %v705, %v704
        %v721 = vpack.c.b16 %v707, %v706
        %v722 = vpack.c.b16 %v709, %v708
        %v723 = vpack.c.b16 %v711, %v710
        %v726 = vunpack.c.l.b16 %v376
        %v727 = vunpack.c.h.b16 %v376
        %v728 = vunpack.c.l.b16 %v377
        %v729 = vunpack.c.h.b16 %v377
        %v730 = vpack.c.b16 %v728, %v726
        %v731 = vpack.c.b16 %v729, %v727
        %v735 = vsel %vm474, %v712, 0
        %v738 = vsel %vm474, %v713, 0
        %v741 = vsel %vm474, %v714, 0
        %v744 = vsel %vm474, %v715, 0
        %v747 = vsel %vm474, %v716, 0
        %v750 = vsel %vm474, %v717, 0
        %v753 = vsel %vm474, %v718, 0
        %v756 = vsel %vm474, %v719, 0
        %v759 = vsel %vm474, %v720, 0
        %v762 = vsel %vm474, %v721, 0
        %v765 = vsel %vm474, %v722, 0
        %v768 = vsel %vm474, %v723, 0
        %770 = vmatprep.subr.bf16.mxu0 %v731
        %771 = vmatpush1.bf16.msra.mxu0 %v730
        %772 = vmatprep.subr.bf16.mxu0 0
        %773 = vmatpush1.bf16.msra.mxu0 0
        %774 = vmatprep.subr.bf16.mxu0 0
        %775 = vmatpush1.bf16.msra.mxu0 0
        %776 = vmatprep.subr.bf16.mxu0 0
        %777 = vmatpush1.bf16.msra.mxu0 0
        %778 = vmatprep.subr.bf16.mxu0 0
        %779 = vmatpush1.bf16.msra.mxu0 0
        %780 = vmatprep.subr.bf16.mxu0 0
        %781 = vmatpush1.bf16.msra.mxu0 0
        %782 = vmatprep.subr.bf16.mxu0 0
        %783 = vmatpush1.bf16.msra.mxu0 0
        %784 = vmatprep.subr.bf16.mxu0 0
        %785 = vmatpush1.bf16.msra.mxu0 0
        %786 = vmatprep.subr.bf16.mxu0 0
        %787 = vmatpush1.bf16.msra.mxu0 0
        %788 = vmatprep.subr.bf16.mxu0 0
        %789 = vmatpush1.bf16.msra.mxu0 0
        %790 = vmatprep.subr.bf16.mxu0 0
        %791 = vmatpush1.bf16.msra.mxu0 0
        %792 = vmatprep.subr.bf16.mxu0 0
        %793 = vmatpush1.bf16.msra.mxu0 0
        %794 = vmatprep.subr.bf16.mxu0 0
        %795 = vmatpush1.bf16.msra.mxu0 0
        %796 = vmatprep.subr.bf16.mxu0 0
        %797 = vmatpush1.bf16.msra.mxu0 0
        %798 = vmatprep.subr.bf16.mxu0 0
        %799 = vmatpush1.bf16.msra.mxu0 0
        %800 = vmatprep.subr.bf16.mxu0 0
        %801 = vmatpush1.bf16.msra.mxu0 0
        %802 = vmatprep.mubr.bf16.mxu0 0
        %803 = vmatmul.mubr.bf16.gmra.mrb[0].mxu0 %v735
        %v804 = vpop.f32.mrb[0].mxu0
        %v805 = vadd.f32 %v546, %v804
        %v806 = vpop.f32.mrb[0].mxu0
        %v807 = vadd.f32 %v548, %v806
        %v808 = vpop.f32.mrb[0].mxu0
        %v809 = vadd.f32 %v550, %v808
        %v810 = vpop.f32.mrb[0].mxu0
        %v811 = vadd.f32 %v552, %v810
        %812 = vmatprep.mubr.bf16.mxu0 0
        %813 = vmatmul.mubr.bf16.gmra.mrb[0].mxu0 %v738
        %v814 = vpop.f32.mrb[0].mxu0
        %v815 = vadd.f32 %v556, %v814
        %v816 = vpop.f32.mrb[0].mxu0
        %v817 = vadd.f32 %v558, %v816
        %v818 = vpop.f32.mrb[0].mxu0
        %v819 = vadd.f32 %v560, %v818
        %v820 = vpop.f32.mrb[0].mxu0
        %v821 = vadd.f32 %v562, %v820
        %822 = vmatprep.mubr.bf16.mxu0 0
        %823 = vmatmul.mubr.bf16.gmra.mrb[0].mxu0 %v741
        %v824 = vpop.f32.mrb[0].mxu0
        %v825 = vadd.f32 %v566, %v824
        %v826 = vpop.f32.mrb[0].mxu0
        %v827 = vadd.f32 %v568, %v826
        %v828 = vpop.f32.mrb[0].mxu0
        %v829 = vadd.f32 %v570, %v828
        %v830 = vpop.f32.mrb[0].mxu0
        %v831 = vadd.f32 %v572, %v830
        %832 = vmatprep.mubr.bf16.mxu0 0
        %833 = vmatmul.mubr.bf16.gmra.mrb[0].mxu0 %v744
        %v834 = vpop.f32.mrb[0].mxu0
        %v835 = vadd.f32 %v576, %v834
        %v836 = vpop.f32.mrb[0].mxu0
        %v837 = vadd.f32 %v578, %v836
        %v838 = vpop.f32.mrb[0].mxu0
        %v839 = vadd.f32 %v580, %v838
        %v840 = vpop.f32.mrb[0].mxu0
        %v841 = vadd.f32 %v582, %v840
        %842 = vmatprep.mubr.bf16.mxu0 0
        %843 = vmatmul.mubr.bf16.gmra.mrb[0].mxu0 %v747
        %v844 = vpop.f32.mrb[0].mxu0
        %v845 = vadd.f32 %v586, %v844
        %v846 = vpop.f32.mrb[0].mxu0
        %v847 = vadd.f32 %v588, %v846
        %v848 = vpop.f32.mrb[0].mxu0
        %v849 = vadd.f32 %v590, %v848
        %v850 = vpop.f32.mrb[0].mxu0
        %v851 = vadd.f32 %v592, %v850
        %852 = vmatprep.mubr.bf16.mxu0 0
        %853 = vmatmul.mubr.bf16.gmra.mrb[0].mxu0 %v750
        %v854 = vpop.f32.mrb[0].mxu0
        %v855 = vadd.f32 %v596, %v854
        %v856 = vpop.f32.mrb[0].mxu0
        %v857 = vadd.f32 %v598, %v856
        %v858 = vpop.f32.mrb[0].mxu0
        %v859 = vadd.f32 %v600, %v858
        %v860 = vpop.f32.mrb[0].mxu0
        %v861 = vadd.f32 %v602, %v860
        %862 = vmatprep.mubr.bf16.mxu0 0
        %863 = vmatmul.mubr.bf16.gmra.mrb[0].mxu0 %v753
        %v864 = vpop.f32.mrb[0].mxu0
        %v865 = vadd.f32 %v606, %v864
        %v866 = vpop.f32.mrb[0].mxu0
        %v867 = vadd.f32 %v608, %v866
        %v868 = vpop.f32.mrb[0].mxu0
        %v869 = vadd.f32 %v610, %v868
        %v870 = vpop.f32.mrb[0].mxu0
        %v871 = vadd.f32 %v612, %v870
        %872 = vmatprep.mubr.bf16.mxu0 0
        %873 = vmatmul.mubr.bf16.gmra.mrb[0].mxu0 %v756
        %v874 = vpop.f32.mrb[0].mxu0
        %v875 = vadd.f32 %v616, %v874
        %v876 = vpop.f32.mrb[0].mxu0
        %v877 = vadd.f32 %v618, %v876
        %v878 = vpop.f32.mrb[0].mxu0
        %v879 = vadd.f32 %v620, %v878
        %v880 = vpop.f32.mrb[0].mxu0
        %v881 = vadd.f32 %v622, %v880
        %882 = vmatprep.mubr.bf16.mxu0 0
        %883 = vmatmul.mubr.bf16.gmra.mrb[0].mxu0 %v759
        %v884 = vpop.f32.mrb[0].mxu0
        %v885 = vadd.f32 %v626, %v884
        %v886 = vpop.f32.mrb[0].mxu0
        %v887 = vadd.f32 %v628, %v886
        %v888 = vpop.f32.mrb[0].mxu0
        %v889 = vadd.f32 %v630, %v888
        %v890 = vpop.f32.mrb[0].mxu0
        %v891 = vadd.f32 %v632, %v890
        %892 = vmatprep.mubr.bf16.mxu0 0
        %893 = vmatmul.mubr.bf16.gmra.mrb[0].mxu0 %v762
        %v894 = vpop.f32.mrb[0].mxu0
        %v895 = vadd.f32 %v636, %v894
        %v896 = vpop.f32.mrb[0].mxu0
        %v897 = vadd.f32 %v638, %v896
        %v898 = vpop.f32.mrb[0].mxu0
        %v899 = vadd.f32 %v640, %v898
        %v900 = vpop.f32.mrb[0].mxu0
        %v901 = vadd.f32 %v642, %v900
        %902 = vmatprep.mubr.bf16.mxu0 0
        %903 = vmatmul.mubr.bf16.gmra.mrb[0].mxu0 %v765
        %v904 = vpop.f32.mrb[0].mxu0
        %v905 = vadd.f32 %v646, %v904
        %v906 = vpop.f32.mrb[0].mxu0
        %v907 = vadd.f32 %v648, %v906
        %v908 = vpop.f32.mrb[0].mxu0
        %v909 = vadd.f32 %v650, %v908
        %v910 = vpop.f32.mrb[0].mxu0
        %v911 = vadd.f32 %v652, %v910
        %912 = vmatprep.mubr.bf16.mxu0 0
        %913 = vmatmul.mubr.bf16.gmra.mrb[0].mxu0 %v768
        %v914 = vpop.f32.mrb[0].mxu0
        %v915 = vadd.f32 %v656, %v914
        %v916 = vpop.f32.mrb[0].mxu0
        %v917 = vadd.f32 %v658, %v916
        %v918 = vpop.f32.mrb[0].mxu0
        %v919 = vadd.f32 %v660, %v918
        %v920 = vpop.f32.mrb[0].mxu0
        %v921 = vadd.f32 %v662, %v920
        %922 = vdwg.mxu0
        %v923 = vld [vmem:[%s4] sm:$0xff]
        %v924 = vld [vmem:[%s4 + $0x8] sm:$0xff]
        %v925 = vld [vmem:[%s4 + $0x10] sm:$0xff]
        %v926 = vld [vmem:[%s4 + $0x18] sm:$0xff]
        %v927 = vld [vmem:[%s4 + $0x20] sm:$0xff]
        %v928 = vld [vmem:[%s4 + $0x28] sm:$0xff]
        %v929 = vld [vmem:[%s4 + $0x30] sm:$0xff]
        %v930 = vld [vmem:[%s4 + $0x38] sm:$0xff]
        %v931 = vld [vmem:[%s4 + $0x40] sm:$0xff]
        %v932 = vld [vmem:[%s4 + $0x48] sm:$0xff]
        %v933 = vld [vmem:[%s4 + $0x50] sm:$0xff]
        %v934 = vld [vmem:[%s4 + $0x58] sm:$0xff]
        %v935 = vld [vmem:[%s4 + $0x60] sm:$0xff]
        %v936 = vld [vmem:[%s4 + $0x68] sm:$0xff]
        %v937 = vld [vmem:[%s4 + $0x70] sm:$0xff]
        %v938 = vld [vmem:[%s4 + $0x78] sm:$0xff]
        %v939 = vld [vmem:[%s4 + $0x80] sm:$0xff]
        %v940 = vld [vmem:[%s4 + $0x88] sm:$0xff]
        %v941 = vld [vmem:[%s4 + $0x90] sm:$0xff]
        %v942 = vld [vmem:[%s4 + $0x98] sm:$0xff]
        %v943 = vld [vmem:[%s4 + $0xa0] sm:$0xff]
        %v944 = vld [vmem:[%s4 + $0xa8] sm:$0xff]
        %v945 = vld [vmem:[%s4 + $0xb0] sm:$0xff]
        %v946 = vld [vmem:[%s4 + $0xb8] sm:$0xff]
        %948 = vset.pattern.permute.xlu0 0
        %949 = vperm.xlu0 %948, %v923
        %v950 = vpop.permute.xlu0 %949
        %953 = vset.pattern.permute.xlu0 0
        %954 = vperm.xlu0 %953, %v924
        %v955 = vpop.permute.xlu0 %954
        %958 = vset.pattern.permute.xlu0 0
        %959 = vperm.xlu0 %958, %v925
        %v960 = vpop.permute.xlu0 %959
        %963 = vset.pattern.permute.xlu0 0
        %964 = vperm.xlu0 %963, %v926
        %v965 = vpop.permute.xlu0 %964
        %968 = vset.pattern.permute.xlu0 0
        %969 = vperm.xlu0 %968, %v927
        %v970 = vpop.permute.xlu0 %969
        %973 = vset.pattern.permute.xlu0 0
        %974 = vperm.xlu0 %973, %v928
        %v975 = vpop.permute.xlu0 %974
        %978 = vset.pattern.permute.xlu0 0
        %979 = vperm.xlu0 %978, %v929
        %v980 = vpop.permute.xlu0 %979
        %983 = vset.pattern.permute.xlu0 0
        %984 = vperm.xlu0 %983, %v930
        %v985 = vpop.permute.xlu0 %984
        %988 = vset.pattern.permute.xlu0 0
        %989 = vperm.xlu0 %988, %v931
        %v990 = vpop.permute.xlu0 %989
        %993 = vset.pattern.permute.xlu0 0
        %994 = vperm.xlu0 %993, %v932
        %v995 = vpop.permute.xlu0 %994
        %998 = vset.pattern.permute.xlu0 0
        %999 = vperm.xlu0 %998, %v933
        %v1000 = vpop.permute.xlu0 %999
        %1003 = vset.pattern.permute.xlu0 0
        %1004 = vperm.xlu0 %1003, %v934
        %v1005 = vpop.permute.xlu0 %1004
        %1008 = vset.pattern.permute.xlu0 0
        %1009 = vperm.xlu0 %1008, %v935
        %v1010 = vpop.permute.xlu0 %1009
        %1013 = vset.pattern.permute.xlu0 0
        %1014 = vperm.xlu0 %1013, %v936
        %v1015 = vpop.permute.xlu0 %1014
        %1018 = vset.pattern.permute.xlu0 0
        %1019 = vperm.xlu0 %1018, %v937
        %v1020 = vpop.permute.xlu0 %1019
        %1023 = vset.pattern.permute.xlu0 0
        %1024 = vperm.xlu0 %1023, %v938
        %v1025 = vpop.permute.xlu0 %1024
        %1028 = vset.pattern.permute.xlu0 0
        %1029 = vperm.xlu0 %1028, %v939
        %v1030 = vpop.permute.xlu0 %1029
        %1033 = vset.pattern.permute.xlu0 0
        %1034 = vperm.xlu0 %1033, %v940
        %v1035 = vpop.permute.xlu0 %1034
        %1038 = vset.pattern.permute.xlu0 0
        %1039 = vperm.xlu0 %1038, %v941
        %v1040 = vpop.permute.xlu0 %1039
        %1043 = vset.pattern.permute.xlu0 0
        %1044 = vperm.xlu0 %1043, %v942
        %v1045 = vpop.permute.xlu0 %1044
        %1048 = vset.pattern.permute.xlu0 0
        %1049 = vperm.xlu0 %1048, %v943
        %v1050 = vpop.permute.xlu0 %1049
        %1053 = vset.pattern.permute.xlu0 0
        %1054 = vperm.xlu0 %1053, %v944
        %v1055 = vpop.permute.xlu0 %1054
        %1058 = vset.pattern.permute.xlu0 0
        %1059 = vperm.xlu0 %1058, %v945
        %v1060 = vpop.permute.xlu0 %1059
        %1063 = vset.pattern.permute.xlu0 0
        %1064 = vperm.xlu0 %1063, %v946
        %v1065 = vpop.permute.xlu0 %1064
        %v1067 = vadd.f32 %v805, %v950
        %v1068 = vadd.f32 %v807, %v950
        %v1069 = vadd.f32 %v809, %v955
        %v1070 = vadd.f32 %v811, %v955
        %v1071 = vadd.f32 %v815, %v960
        %v1072 = vadd.f32 %v817, %v960
        %v1073 = vadd.f32 %v819, %v965
        %v1074 = vadd.f32 %v821, %v965
        %v1075 = vadd.f32 %v825, %v970
        %v1076 = vadd.f32 %v827, %v970
        %v1077 = vadd.f32 %v829, %v975
        %v1078 = vadd.f32 %v831, %v975
        %v1079 = vadd.f32 %v835, %v980
        %v1080 = vadd.f32 %v837, %v980
        %v1081 = vadd.f32 %v839, %v985
        %v1082 = vadd.f32 %v841, %v985
        %v1083 = vadd.f32 %v845, %v990
        %v1084 = vadd.f32 %v847, %v990
        %v1085 = vadd.f32 %v849, %v995
        %v1086 = vadd.f32 %v851, %v995
        %v1087 = vadd.f32 %v855, %v1000
        %v1088 = vadd.f32 %v857, %v1000
        %v1089 = vadd.f32 %v859, %v1005
        %v1090 = vadd.f32 %v861, %v1005
        %v1091 = vadd.f32 %v865, %v1010
        %v1092 = vadd.f32 %v867, %v1010
        %v1093 = vadd.f32 %v869, %v1015
        %v1094 = vadd.f32 %v871, %v1015
        %v1095 = vadd.f32 %v875, %v1020
        %v1096 = vadd.f32 %v877, %v1020
        %v1097 = vadd.f32 %v879, %v1025
        %v1098 = vadd.f32 %v881, %v1025
        %v1099 = vadd.f32 %v885, %v1030
        %v1100 = vadd.f32 %v887, %v1030
        %v1101 = vadd.f32 %v889, %v1035
        %v1102 = vadd.f32 %v891, %v1035
        %v1103 = vadd.f32 %v895, %v1040
        %v1104 = vadd.f32 %v897, %v1040
        %v1105 = vadd.f32 %v899, %v1045
        %v1106 = vadd.f32 %v901, %v1045
        %v1107 = vadd.f32 %v905, %v1050
        %v1108 = vadd.f32 %v907, %v1050
        %v1109 = vadd.f32 %v909, %v1055
        %v1110 = vadd.f32 %v911, %v1055
        %v1111 = vadd.f32 %v915, %v1060
        %v1112 = vadd.f32 %v917, %v1060
        %v1113 = vadd.f32 %v919, %v1065
        %v1114 = vadd.f32 %v921, %v1065
        %v1115 = vmax.f32 %v1067, 0.0
        %v1116 = vmax.f32 %v1068, 0.0
        %v1117 = vmax.f32 %v1069, 0.0
        %v1118 = vmax.f32 %v1070, 0.0
        %v1119 = vmax.f32 %v1071, 0.0
        %v1120 = vmax.f32 %v1072, 0.0
        %v1121 = vmax.f32 %v1073, 0.0
        %v1122 = vmax.f32 %v1074, 0.0
        %v1123 = vld [vmem:[%s5] sm:$0xf]
        %v1124 = vld [vmem:[%s5 + $0x4] sm:$0xf]
        %v1125 = vld [vmem:[%s5 + $0x8] sm:$0xf]
        %v1126 = vld [vmem:[%s5 + $0xc] sm:$0xf]
        %v1127 = vpack.c.bf16 %v1117, %v1115
        %v1128 = vpack.c.bf16 %v1118, %v1116
        %v1129 = vpack.c.bf16 %v1121, %v1119
        %v1130 = vpack.c.bf16 %v1122, %v1120
        %v1135 = vunpack.c.l.b16 %v1123
        %v1136 = vunpack.c.l.b16 %v1124
        %v1137 = vunpack.c.l.b16 %v1125
        %v1138 = vunpack.c.l.b16 %v1126
        %v1139 = vpack.c.b16 %v1136, %v1135
        %v1140 = vpack.c.b16 %v1138, %v1137
        %vm1141 = vcmask 261120
        %v1143 = vsel %vm1141, %v1139, 0
        %v1146 = vsel %vm1141, %v1140, 0
        %1148 = vmatprep.subr.bf16.mxu0 %v1128
        %1149 = vmatpush1.bf16.msra.mxu0 %v1127
        %1150 = vmatprep.subr.bf16.mxu0 %v1130
        %1151 = vmatpush1.bf16.msra.mxu0 %v1129
        %1152 = vmatprep.subr.bf16.mxu0 0
        %1153 = vmatpush1.bf16.msra.mxu0 0
        %1154 = vmatprep.subr.bf16.mxu0 0
        %1155 = vmatpush1.bf16.msra.mxu0 0
        %1156 = vmatprep.subr.bf16.mxu0 0
        %1157 = vmatpush1.bf16.msra.mxu0 0
        %1158 = vmatprep.subr.bf16.mxu0 0
        %1159 = vmatpush1.bf16.msra.mxu0 0
        %1160 = vmatprep.subr.bf16.mxu0 0
        %1161 = vmatpush1.bf16.msra.mxu0 0
        %1162 = vmatprep.subr.bf16.mxu0 0
        %1163 = vmatpush1.bf16.msra.mxu0 0
        %1164 = vmatprep.subr.bf16.mxu0 0
        %1165 = vmatpush1.bf16.msra.mxu0 0
        %1166 = vmatprep.subr.bf16.mxu0 0
        %1167 = vmatpush1.bf16.msra.mxu0 0
        %1168 = vmatprep.subr.bf16.mxu0 0
        %1169 = vmatpush1.bf16.msra.mxu0 0
        %1170 = vmatprep.subr.bf16.mxu0 0
        %1171 = vmatpush1.bf16.msra.mxu0 0
        %1172 = vmatprep.subr.bf16.mxu0 0
        %1173 = vmatpush1.bf16.msra.mxu0 0
        %1174 = vmatprep.subr.bf16.mxu0 0
        %1175 = vmatpush1.bf16.msra.mxu0 0
        %1176 = vmatprep.subr.bf16.mxu0 0
        %1177 = vmatpush1.bf16.msra.mxu0 0
        %1178 = vmatprep.subr.bf16.mxu0 0
        %1179 = vmatpush1.bf16.msra.mxu0 0
        %1180 = vmatprep.mubr.bf16.mxu0 0
        %1181 = vmatmul.mubr.bf16.gmra.mrb[0].mxu0 %v1143
        %v1182 = vpop.f32.mrb[0].mxu0
        %v1183 = vadd.f32 %v1075, %v1182
        %v1184 = vpop.f32.mrb[0].mxu0
        %v1185 = vadd.f32 %v1076, %v1184
        %v1186 = vpop.f32.mrb[0].mxu0
        %v1187 = vadd.f32 %v1077, %v1186
        %v1188 = vpop.f32.mrb[0].mxu0
        %v1189 = vadd.f32 %v1078, %v1188
        %1190 = vmatprep.mubr.bf16.mxu0 0
        %1191 = vmatmul.mubr.bf16.gmra.mrb[0].mxu0 %v1146
        %v1192 = vpop.f32.mrb[0].mxu0
        %v1193 = vadd.f32 %v1079, %v1192
        %v1194 = vpop.f32.mrb[0].mxu0
        %v1195 = vadd.f32 %v1080, %v1194
        %v1196 = vpop.f32.mrb[0].mxu0
        %v1197 = vadd.f32 %v1081, %v1196
        %v1198 = vpop.f32.mrb[0].mxu0
        %v1199 = vadd.f32 %v1082, %v1198
        %1200 = vdwg.mxu0
        %v1201 = vmax.f32 %v1183, 0.0
        %v1202 = vmax.f32 %v1185, 0.0
        %v1203 = vmax.f32 %v1187, 0.0
        %v1204 = vmax.f32 %v1189, 0.0
        %v1205 = vmax.f32 %v1193, 0.0
        %v1206 = vmax.f32 %v1195, 0.0
        %v1207 = vmax.f32 %v1197, 0.0
        %v1208 = vmax.f32 %v1199, 0.0
        %s1209 = scalar_lea.vmem %s5, 16
        %v1210 = vld [vmem:[%s1209] sm:$0xf]
        %v1211 = vld [vmem:[%s1209 + $0x4] sm:$0xf]
        %v1212 = vld [vmem:[%s1209 + $0x8] sm:$0xf]
        %v1213 = vld [vmem:[%s1209 + $0xc] sm:$0xf]
        %v1214 = vpack.c.bf16 %v1203, %v1201
        %v1215 = vpack.c.bf16 %v1204, %v1202
        %v1216 = vpack.c.bf16 %v1207, %v1205
        %v1217 = vpack.c.bf16 %v1208, %v1206
        %v1222 = vunpack.c.l.b16 %v1210
        %v1223 = vunpack.c.l.b16 %v1211
        %v1224 = vunpack.c.l.b16 %v1212
        %v1225 = vunpack.c.l.b16 %v1213
        %v1226 = vpack.c.b16 %v1223, %v1222
        %v1227 = vpack.c.b16 %v1225, %v1224
        %v1229 = vsel %vm1141, %v1226, 0
        %v1232 = vsel %vm1141, %v1227, 0
        %1234 = vmatprep.subr.bf16.mxu0 %v1215
        %1235 = vmatpush1.bf16.msra.mxu0 %v1214
        %1236 = vmatprep.subr.bf16.mxu0 %v1217
        %1237 = vmatpush1.bf16.msra.mxu0 %v1216
        %1238 = vmatprep.subr.bf16.mxu0 0
        %1239 = vmatpush1.bf16.msra.mxu0 0
        %1240 = vmatprep.subr.bf16.mxu0 0
        %1241 = vmatpush1.bf16.msra.mxu0 0
        %1242 = vmatprep.subr.bf16.mxu0 0
        %1243 = vmatpush1.bf16.msra.mxu0 0
        %1244 = vmatprep.subr.bf16.mxu0 0
        %1245 = vmatpush1.bf16.msra.mxu0 0
        %1246 = vmatprep.subr.bf16.mxu0 0
        %1247 = vmatpush1.bf16.msra.mxu0 0
        %1248 = vmatprep.subr.bf16.mxu0 0
        %1249 = vmatpush1.bf16.msra.mxu0 0
        %1250 = vmatprep.subr.bf16.mxu0 0
        %1251 = vmatpush1.bf16.msra.mxu0 0
        %1252 = vmatprep.subr.bf16.mxu0 0
        %1253 = vmatpush1.bf16.msra.mxu0 0
        %1254 = vmatprep.subr.bf16.mxu0 0
        %1255 = vmatpush1.bf16.msra.mxu0 0
        %1256 = vmatprep.subr.bf16.mxu0 0
        %1257 = vmatpush1.bf16.msra.mxu0 0
        %1258 = vmatprep.subr.bf16.mxu0 0
        %1259 = vmatpush1.bf16.msra.mxu0 0
        %1260 = vmatprep.subr.bf16.mxu0 0
        %1261 = vmatpush1.bf16.msra.mxu0 0
        %1262 = vmatprep.subr.bf16.mxu0 0
        %1263 = vmatpush1.bf16.msra.mxu0 0
        %1264 = vmatprep.subr.bf16.mxu0 0
        %1265 = vmatpush1.bf16.msra.mxu0 0
        %1266 = vmatprep.mubr.bf16.mxu0 0
        %1267 = vmatmul.mubr.bf16.gmra.mrb[0].mxu0 %v1229
        %v1268 = vpop.f32.mrb[0].mxu0
        %v1269 = vadd.f32 %v1083, %v1268
        %v1270 = vpop.f32.mrb[0].mxu0
        %v1271 = vadd.f32 %v1084, %v1270
        %v1272 = vpop.f32.mrb[0].mxu0
        %v1273 = vadd.f32 %v1085, %v1272
        %v1274 = vpop.f32.mrb[0].mxu0
        %v1275 = vadd.f32 %v1086, %v1274
        %1276 = vmatprep.mubr.bf16.mxu0 0
        %1277 = vmatmul.mubr.bf16.gmra.mrb[0].mxu0 %v1232
        %v1278 = vpop.f32.mrb[0].mxu0
        %v1279 = vadd.f32 %v1087, %v1278
        %v1280 = vpop.f32.mrb[0].mxu0
        %v1281 = vadd.f32 %v1088, %v1280
        %v1282 = vpop.f32.mrb[0].mxu0
        %v1283 = vadd.f32 %v1089, %v1282
        %v1284 = vpop.f32.mrb[0].mxu0
        %v1285 = vadd.f32 %v1090, %v1284
        %1286 = vdwg.mxu0
        %v1287 = vmax.f32 %v1269, 0.0
        %v1288 = vmax.f32 %v1271, 0.0
        %v1289 = vmax.f32 %v1273, 0.0
        %v1290 = vmax.f32 %v1275, 0.0
        %v1291 = vmax.f32 %v1279, 0.0
        %v1292 = vmax.f32 %v1281, 0.0
        %v1293 = vmax.f32 %v1283, 0.0
        %v1294 = vmax.f32 %v1285, 0.0
        %s1295 = scalar_lea.vmem %s5, 32
        %v1296 = vld [vmem:[%s1295] sm:$0xf]
        %v1297 = vld [vmem:[%s1295 + $0x4] sm:$0xf]
        %v1298 = vld [vmem:[%s1295 + $0x8] sm:$0xf]
        %v1299 = vld [vmem:[%s1295 + $0xc] sm:$0xf]
        %v1300 = vpack.c.bf16 %v1289, %v1287
        %v1301 = vpack.c.bf16 %v1290, %v1288
        %v1302 = vpack.c.bf16 %v1293, %v1291
        %v1303 = vpack.c.bf16 %v1294, %v1292
        %v1308 = vunpack.c.l.b16 %v1296
        %v1309 = vunpack.c.l.b16 %v1297
        %v1310 = vunpack.c.l.b16 %v1298
        %v1311 = vunpack.c.l.b16 %v1299
        %v1312 = vpack.c.b16 %v1309, %v1308
        %v1313 = vpack.c.b16 %v1311, %v1310
        %v1315 = vsel %vm1141, %v1312, 0
        %v1318 = vsel %vm1141, %v1313, 0
        %1320 = vmatprep.subr.bf16.mxu0 %v1301
        %1321 = vmatpush1.bf16.msra.mxu0 %v1300
        %1322 = vmatprep.subr.bf16.mxu0 %v1303
        %1323 = vmatpush1.bf16.msra.mxu0 %v1302
        %1324 = vmatprep.subr.bf16.mxu0 0
        %1325 = vmatpush1.bf16.msra.mxu0 0
        %1326 = vmatprep.subr.bf16.mxu0 0
        %1327 = vmatpush1.bf16.msra.mxu0 0
        %1328 = vmatprep.subr.bf16.mxu0 0
        %1329 = vmatpush1.bf16.msra.mxu0 0
        %1330 = vmatprep.subr.bf16.mxu0 0
        %1331 = vmatpush1.bf16.msra.mxu0 0
        %1332 = vmatprep.subr.bf16.mxu0 0
        %1333 = vmatpush1.bf16.msra.mxu0 0
        %1334 = vmatprep.subr.bf16.mxu0 0
        %1335 = vmatpush1.bf16.msra.mxu0 0
        %1336 = vmatprep.subr.bf16.mxu0 0
        %1337 = vmatpush1.bf16.msra.mxu0 0
        %1338 = vmatprep.subr.bf16.mxu0 0
        %1339 = vmatpush1.bf16.msra.mxu0 0
        %1340 = vmatprep.subr.bf16.mxu0 0
        %1341 = vmatpush1.bf16.msra.mxu0 0
        %1342 = vmatprep.subr.bf16.mxu0 0
        %1343 = vmatpush1.bf16.msra.mxu0 0
        %1344 = vmatprep.subr.bf16.mxu0 0
        %1345 = vmatpush1.bf16.msra.mxu0 0
        %1346 = vmatprep.subr.bf16.mxu0 0
        %1347 = vmatpush1.bf16.msra.mxu0 0
        %1348 = vmatprep.subr.bf16.mxu0 0
        %1349 = vmatpush1.bf16.msra.mxu0 0
        %1350 = vmatprep.subr.bf16.mxu0 0
        %1351 = vmatpush1.bf16.msra.mxu0 0
        %1352 = vmatprep.mubr.bf16.mxu0 0
        %1353 = vmatmul.mubr.bf16.gmra.mrb[0].mxu0 %v1315
        %v1354 = vpop.f32.mrb[0].mxu0
        %v1355 = vadd.f32 %v1091, %v1354
        %v1356 = vpop.f32.mrb[0].mxu0
        %v1357 = vadd.f32 %v1092, %v1356
        %v1358 = vpop.f32.mrb[0].mxu0
        %v1359 = vadd.f32 %v1093, %v1358
        %v1360 = vpop.f32.mrb[0].mxu0
        %v1361 = vadd.f32 %v1094, %v1360
        %1362 = vmatprep.mubr.bf16.mxu0 0
        %1363 = vmatmul.mubr.bf16.gmra.mrb[0].mxu0 %v1318
        %v1364 = vpop.f32.mrb[0].mxu0
        %v1365 = vadd.f32 %v1095, %v1364
        %v1366 = vpop.f32.mrb[0].mxu0
        %v1367 = vadd.f32 %v1096, %v1366
        %v1368 = vpop.f32.mrb[0].mxu0
        %v1369 = vadd.f32 %v1097, %v1368
        %v1370 = vpop.f32.mrb[0].mxu0
        %v1371 = vadd.f32 %v1098, %v1370
        %1372 = vdwg.mxu0
        %v1373 = vmax.f32 %v1355, 0.0
        %v1374 = vmax.f32 %v1357, 0.0
        %v1375 = vmax.f32 %v1359, 0.0
        %v1376 = vmax.f32 %v1361, 0.0
        %v1377 = vmax.f32 %v1365, 0.0
        %v1378 = vmax.f32 %v1367, 0.0
        %v1379 = vmax.f32 %v1369, 0.0
        %v1380 = vmax.f32 %v1371, 0.0
        %s1381 = scalar_lea.vmem %s5, 48
        %v1382 = vld [vmem:[%s1381] sm:$0xf]
        %v1383 = vld [vmem:[%s1381 + $0x4] sm:$0xf]
        %v1384 = vld [vmem:[%s1381 + $0x8] sm:$0xf]
        %v1385 = vld [vmem:[%s1381 + $0xc] sm:$0xf]
        %v1386 = vpack.c.bf16 %v1375, %v1373
        %v1387 = vpack.c.bf16 %v1376, %v1374
        %v1388 = vpack.c.bf16 %v1379, %v1377
        %v1389 = vpack.c.bf16 %v1380, %v1378
        %v1394 = vunpack.c.l.b16 %v1382
        %v1395 = vunpack.c.l.b16 %v1383
        %v1396 = vunpack.c.l.b16 %v1384
        %v1397 = vunpack.c.l.b16 %v1385
        %v1398 = vpack.c.b16 %v1395, %v1394
        %v1399 = vpack.c.b16 %v1397, %v1396
        %v1401 = vsel %vm1141, %v1398, 0
        %v1404 = vsel %vm1141, %v1399, 0
        %1406 = vmatprep.subr.bf16.mxu0 %v1387
        %1407 = vmatpush1.bf16.msra.mxu0 %v1386
        %1408 = vmatprep.subr.bf16.mxu0 %v1389
        %1409 = vmatpush1.bf16.msra.mxu0 %v1388
        %1410 = vmatprep.subr.bf16.mxu0 0
        %1411 = vmatpush1.bf16.msra.mxu0 0
        %1412 = vmatprep.subr.bf16.mxu0 0
        %1413 = vmatpush1.bf16.msra.mxu0 0
        %1414 = vmatprep.subr.bf16.mxu0 0
        %1415 = vmatpush1.bf16.msra.mxu0 0
        %1416 = vmatprep.subr.bf16.mxu0 0
        %1417 = vmatpush1.bf16.msra.mxu0 0
        %1418 = vmatprep.subr.bf16.mxu0 0
        %1419 = vmatpush1.bf16.msra.mxu0 0
        %1420 = vmatprep.subr.bf16.mxu0 0
        %1421 = vmatpush1.bf16.msra.mxu0 0
        %1422 = vmatprep.subr.bf16.mxu0 0
        %1423 = vmatpush1.bf16.msra.mxu0 0
        %1424 = vmatprep.subr.bf16.mxu0 0
        %1425 = vmatpush1.bf16.msra.mxu0 0
        %1426 = vmatprep.subr.bf16.mxu0 0
        %1427 = vmatpush1.bf16.msra.mxu0 0
        %1428 = vmatprep.subr.bf16.mxu0 0
        %1429 = vmatpush1.bf16.msra.mxu0 0
        %1430 = vmatprep.subr.bf16.mxu0 0
        %1431 = vmatpush1.bf16.msra.mxu0 0
        %1432 = vmatprep.subr.bf16.mxu0 0
        %1433 = vmatpush1.bf16.msra.mxu0 0
        %1434 = vmatprep.subr.bf16.mxu0 0
        %1435 = vmatpush1.bf16.msra.mxu0 0
        %1436 = vmatprep.subr.bf16.mxu0 0
        %1437 = vmatpush1.bf16.msra.mxu0 0
        %1438 = vmatprep.mubr.bf16.mxu0 0
        %1439 = vmatmul.mubr.bf16.gmra.mrb[0].mxu0 %v1401
        %v1440 = vpop.f32.mrb[0].mxu0
        %v1441 = vadd.f32 %v1099, %v1440
        %v1442 = vpop.f32.mrb[0].mxu0
        %v1443 = vadd.f32 %v1100, %v1442
        %v1444 = vpop.f32.mrb[0].mxu0
        %v1445 = vadd.f32 %v1101, %v1444
        %v1446 = vpop.f32.mrb[0].mxu0
        %v1447 = vadd.f32 %v1102, %v1446
        %1448 = vmatprep.mubr.bf16.mxu0 0
        %1449 = vmatmul.mubr.bf16.gmra.mrb[0].mxu0 %v1404
        %v1450 = vpop.f32.mrb[0].mxu0
        %v1451 = vadd.f32 %v1103, %v1450
        %v1452 = vpop.f32.mrb[0].mxu0
        %v1453 = vadd.f32 %v1104, %v1452
        %v1454 = vpop.f32.mrb[0].mxu0
        %v1455 = vadd.f32 %v1105, %v1454
        %v1456 = vpop.f32.mrb[0].mxu0
        %v1457 = vadd.f32 %v1106, %v1456
        %1458 = vdwg.mxu0
        %v1459 = vadd.f32 %v1441, %v1107
        %v1460 = vadd.f32 %v1443, %v1108
        %v1461 = vadd.f32 %v1445, %v1109
        %v1462 = vadd.f32 %v1447, %v1110
        %v1463 = vadd.f32 %v1451, %v1111
        %v1464 = vadd.f32 %v1453, %v1112
        %v1465 = vadd.f32 %v1455, %v1113
        %v1466 = vadd.f32 %v1457, %v1114
        %v1467 = vmax.f32 %v1459, 0.0
        %v1468 = vmax.f32 %v1460, 0.0
        %v1469 = vmax.f32 %v1461, 0.0
        %v1470 = vmax.f32 %v1462, 0.0
        %v1471 = vmax.f32 %v1463, 0.0
        %v1472 = vmax.f32 %v1464, 0.0
        %v1473 = vmax.f32 %v1465, 0.0
        %v1474 = vmax.f32 %v1466, 0.0
        %1475 = vst [vmem:[%s347] sm:$0xff] %v1467
        %1476 = vst [vmem:[%s347 + $0x8] sm:$0xff] %v1468
        %1477 = vst [vmem:[%s347 + $0x10] sm:$0xff] %v1469
        %1478 = vst [vmem:[%s347 + $0x18] sm:$0xff] %v1470
        %1479 = vst [vmem:[%s347 + $0x20] sm:$0xff] %v1471
        %1480 = vst [vmem:[%s347 + $0x28] sm:$0xff] %v1472
        %1481 = vst [vmem:[%s347 + $0x30] sm:$0xff] %v1473
        %1482 = vst [vmem:[%s347 + $0x38] sm:$0xff] %v1474
        %s1483 = sand.u32 %s164, 1
        %s1484 = scalar_lea.sflag [#allocation5], %s1483
        %s1485 = sand.u32 %s164, 1
        %s1486 = smul.addr %s1485, 64
        %s1487 = scalar_lea.vmem [#allocation4], %s1486
        // Predicated region
        $region121: #{tpu_custom_call.1} parent=111 // pred_check
          %p1488 = pneg %p174
        $region122: #{tpu_custom_call.1} parent=111 // pred_check_branch
          %1490 = sbr.rel (%p1488) target = $region124
        $region123: #{tpu_custom_call.1} parent=111 // pred_region
          %s1491 = smul.u32 2, %s20
          %s1493 = ssub.s32 1024, 1024
          %1494 = vsyncadd %s1484, %s1493
          %s1495 = smul.addr %s1491, 128
          %s1496 = scalar_lea.hbm %s6, %s1495
          %s1497 = sshll.u32 %s1487, 4
          %s1498 = int_to_ptr.vmem [resolvable:$true] %s1497
          %1503 = dma.vmem_to_hbm [thread:$0]  %s1498, 1024, %s1496, %s1484, 256, 512, 16
        $region124: #{tpu_custom_call.1} parent=111 // pred_fallthru
          _
      $region112: #{tpu_custom_call.1} parent=5 // pred_fallthru
        _
      %p1504 = scmp.le.s32.totalorder 2, %s15
      // Predicated region
      $region125: #{tpu_custom_call.1} parent=5 // pred_check
        %p1505 = pneg %p1504
      $region126: #{tpu_custom_call.1} parent=5 // pred_check_branch
        %1507 = sbr.rel (%p1505) target = $region128
      $region127: #{tpu_custom_call.1} parent=5 // pred_region
        %s1508 = ssub.s32 %s15, 2
        // Predicated region
        $region129: #{tpu_custom_call.1} parent=127 // pred_check
          %p1509 = pneg %p180
        $region130: #{tpu_custom_call.1} parent=127 // pred_check_branch
          %1511 = sbr.rel (%p1509) target = $region132
        $region131: #{tpu_custom_call.1} parent=127 // pred_region
          %s1512 = sand.u32 %s165, 1
          %s1513 = scalar_lea.sflag [#allocation5], %s1512
          %s1514 = sand.u32 %s165, 1
          %s1515 = smul.addr %s1514, 64
          %s1516 = scalar_lea.vmem [#allocation4], %s1515
          %1517 = dma.done %s1513, 1024
        $region132: #{tpu_custom_call.1} parent=127 // pred_fallthru
          _
      $region128: #{tpu_custom_call.1} parent=5 // pred_fallthru
        _
    $region6: #{tpu_custom_call.1} parent=1 // loop_footer
      %s19 = sadd.s32 1, %s15
    $region7: #{tpu_custom_call.1} parent=1 // loop_footer_branch
      %14 = sbr.rel target = $region3
    $region8: #{tpu_custom_call.1} parent=1 // loop_exit
      _
    %1518 = vsyncpa [#allocation5], 1
    %s1519 = scalar_lea.sflag [#allocation5], 1
    %1520 = vsyncpa %s1519, 1

</llo_original>
